<compile_context>
chip_gen: v7x
topology: tpu7x:2x2x1
jax: 0.10.0
libtpu: 0.0.40
codegen_flags: <defaults>
</compile_context>

<pallas_src>
import functools

import jax
import jax.numpy as jnp
import numpy as np
from jax.experimental import pallas as pl
from jax.experimental.pallas import tpu as pltpu


def _round_up(x, m):
    return ((x + m - 1) // m) * m


# ----------------------------------------------------------------------------
# Kernel
# ----------------------------------------------------------------------------
def _mha_kernel(x_ref, wqkv_ref, bqkv_ref, wo_ref, bo_ref, o_ref, *,
                num_heads: int, head_dim_padded: int, emb_size: int):
    H, Dp = num_heads, head_dim_padded
    Bt, N, E = x_ref.shape
    inv_scale = 1.0 / (emb_size ** 0.5)        # module scales by sqrt(emb_size)

    # ---- one wide fused Q/K/V projection for ALL heads ---------------------
    # (Bt, N, E) -> (Bt*N, E) is layout-free when N % 8 == 0 (f32 sublanes).
    xf = x_ref[...].reshape(Bt * N, E).astype(jnp.bfloat16)
    qkv = jnp.dot(xf, wqkv_ref[...], preferred_element_type=jnp.float32)
    qkv = qkv + bqkv_ref[...]                  # (Bt*N, H*3*Dp) f32

    # output-projection accumulator; bias added once in the epilogue.
    acc = jnp.zeros((Bt * N, E), jnp.float32)

    # ---- per-head attention: static unroll, 128-lane-aligned slices --------
    for h in range(H):
        base = h * 3 * Dp
        q = (qkv[:, base + 0 * Dp: base + 1 * Dp] * inv_scale).astype(jnp.bfloat16)
        k = qkv[:, base + 1 * Dp: base + 2 * Dp].astype(jnp.bfloat16)
        v = qkv[:, base + 2 * Dp: base + 3 * Dp].astype(jnp.bfloat16)
        q = q.reshape(Bt, N, Dp)
        k = k.reshape(Bt, N, Dp)
        v = v.reshape(Bt, N, Dp)

        # scaled dot-product attention (leading-batch dots, no transposes)
        energy = jnp.einsum('bqd,bkd->bqk', q, k,
                            preferred_element_type=jnp.float32)   # (Bt, N, N)
        s = energy - jnp.max(energy, axis=-1, keepdims=True)
        p = jnp.exp(s)
        att = p * pl.reciprocal(jnp.sum(p, axis=-1, keepdims=True), approx=True)
        # dropout: identity at inference

        out_h = jnp.einsum('bqk,bkd->bqd', att.astype(jnp.bfloat16), v,
                           preferred_element_type=jnp.float32)    # (Bt, N, Dp)

        # head-h slice of the output projection (zero-padded Dp rows add 0)
        acc = acc + jnp.dot(out_h.reshape(Bt * N, Dp).astype(jnp.bfloat16),
                            wo_ref[h], preferred_element_type=jnp.float32)

    # single dense store per batch block (lane-dense when E % 128 == 0)
    o_ref[...] = (acc + bo_ref[...]).reshape(Bt, N, E).astype(o_ref.dtype)


# ----------------------------------------------------------------------------
# Host-side sizing helpers
# ----------------------------------------------------------------------------
def _vmem_capacity_bytes():
    try:
        info = pltpu.get_tpu_info()
        cap = getattr(info, "vmem_capacity_bytes", None)
        if cap:
            return int(cap)
    except Exception:
        pass
    return 64 * 1024 * 1024        # conservative default (v7x per-core VMEM)


def _vmem_bytes_estimate(bt, N, E, H, Dp):
    rows = bt * N
    io = 2 * rows * E * 4 * 2                                   # x + out blocks, dbl-buffered f32
    wts = 2 * (E * 3 * H * Dp + H * Dp * E + 3 * H * Dp + E) * 2  # bf16 weights, dbl-buffered
    qkv = rows * 3 * H * Dp * (4 + 2)                           # f32 projection + bf16 slices
    scores = rows * N * 4 * 3                                   # energy / exp / att (one head live)
    misc = rows * Dp * 4 * 2 + rows * E * 4                     # out_h / contrib / accumulator
    return io + wts + qkv + scores + misc


def _pick_batch_block(B, N, E, H, Dp, vmem_budget):
    divisors = [d for d in range(B, 0, -1) if B % d == 0]
    bt = 1
    for d in divisors:                              # largest block that fits VMEM
        if _vmem_bytes_estimate(d, N, E, H, Dp) <= vmem_budget:
            bt = d
            break
    # keep >= 2 grid steps when possible so both v7x TensorCores get work
    if B > 1 and B // bt < 2:
        for d in divisors:
            if d <= bt and B // d >= 2:
                bt = d
                break
    return bt


# ----------------------------------------------------------------------------
# Wrapper
# ----------------------------------------------------------------------------
def multi_head_attention(x, params, num_heads, *, batch_block=None):
    """x: (B, N, E) float32. params: PyTorch-convention weights (W is (out, in))."""
    B, N, E = x.shape
    H = num_heads
    assert E % H == 0
    D = E // H
    Dp = _round_up(D, 128)       # lane-aligned per-head width (zero-padded)

    f32, bf16 = jnp.float32, jnp.bfloat16

    # ---- host-side weight packing: head-major, lane-aligned ----------------
    def head_cols(w):                       # (E_out, E_in) -> (E_in, H, Dp)
        wt = jnp.asarray(w, f32).T.reshape(E, H, D)
        if Dp != D:
            wt = jnp.concatenate([wt, jnp.zeros((E, H, Dp - D), f32)], axis=-1)
        return wt

    def head_bias(b):                       # (E,) -> (H, Dp)
        bb = jnp.asarray(b, f32).reshape(H, D)
        if Dp != D:
            bb = jnp.concatenate([bb, jnp.zeros((H, Dp - D), f32)], axis=-1)
        return bb

    # columns laid out [head0: Q|K|V, head1: Q|K|V, ...], each segment Dp wide
    w_qkv = jnp.stack([head_cols(params["wq"]),
                       head_cols(params["wk"]),
                       head_cols(params["wv"])], axis=2)          # (E, H, 3, Dp)
    w_qkv = w_qkv.reshape(E, H * 3 * Dp).astype(bf16)

    b_qkv = jnp.stack([head_bias(params["bq"]),
                       head_bias(params["bk"]),
                       head_bias(params["bv"])], axis=1)          # (H, 3, Dp)
    b_qkv = b_qkv.reshape(1, H * 3 * Dp).astype(f32)

    w_o = jnp.asarray(params["wo"], f32).T.reshape(H, D, E)        # (H, D, E)
    if Dp != D:
        w_o = jnp.concatenate([w_o, jnp.zeros((H, Dp - D, E), f32)], axis=1)
    w_o = w_o.astype(bf16)                                         # (H, Dp, E)
    b_o = jnp.asarray(params["bo"], f32).reshape(1, E)

    # ---- per-generation VMEM budget and batch-block size -------------------
    vmem_budget = int(_vmem_capacity_bytes() * 0.85)               # leave headroom
    Bt = batch_block if batch_block is not None else _pick_batch_block(
        B, N, E, H, Dp, vmem_budget)
    assert B % Bt == 0
    grid = (B // Bt,)
    vmem_limit = int(min(vmem_budget, 112 * 1024 * 1024))

    kernel = functools.partial(_mha_kernel, num_heads=H,
                               head_dim_padded=Dp, emb_size=E)

    return pl.pallas_call(
        kernel,
        out_shape=jax.ShapeDtypeStruct((B, N, E), x.dtype),
        grid_spec=pltpu.PrefetchScalarGridSpec(
            num_scalar_prefetch=0,
            grid=grid,
            in_specs=[
                pl.BlockSpec((Bt, N, E), lambda b: (b, 0, 0)),       # x (per batch block)
                # weights/biases: constant index_map -> DMA'd once, grid-resident
                pl.BlockSpec((E, H * 3 * Dp), lambda b: (0, 0)),     # fused QKV weights
                pl.BlockSpec((1, H * 3 * Dp), lambda b: (0, 0)),     # fused QKV bias
                pl.BlockSpec((H, Dp, E), lambda b: (0, 0, 0)),       # output projection
                pl.BlockSpec((1, E), lambda b: (0, 0)),              # output bias
            ],
            out_specs=pl.BlockSpec((Bt, N, E), lambda b: (b, 0, 0)),
        ),
        compiler_params=pltpu.CompilerParams(
            dimension_semantics=("parallel",),
            vmem_limit_bytes=vmem_limit,
        ),
    )(x, w_qkv, b_qkv, w_o, b_o)


# ----------------------------------------------------------------------------
# Pure-JAX f32 reference mirroring the PyTorch forward (mask=None, eval)
# ----------------------------------------------------------------------------
def _reference(x, params, num_heads):
    B, N, E = x.shape
    H = num_heads
    D = E // H

    def lin(t, w, b):
        return jnp.einsum("bne,oe->bno", t, w) + b

    q = lin(x, params["wq"], params["bq"]).reshape(B, N, H, D).transpose(0, 2, 1, 3)
    k = lin(x, params["wk"], params["bk"]).reshape(B, N, H, D).transpose(0, 2, 1, 3)
    v = lin(x, params["wv"], params["bv"]).reshape(B, N, H, D).transpose(0, 2, 1, 3)
    energy = jnp.einsum("bhqd,bhkd->bhqk", q, k)
    att = jax.nn.softmax(energy / (E ** 0.5), axis=-1)
    out = jnp.einsum("bhal,bhlv->bhav", att, v)
    out = out.transpose(0, 2, 1, 3).reshape(B, N, E)
    return lin(out, params["wo"], params["bo"])


if __name__ == "__main__":
    B, N, E, H = 2, 8, 32, 4  # batch, seq, emb_size, num_heads

    key = jax.random.PRNGKey(0)
    keys = jax.random.split(key, 9)
    scale = 1.0 / np.sqrt(E)

    # Deterministic synthetic parameters (nn.Linear convention: W is (out, in)).
    params = {
        "wq": jax.random.uniform(keys[0], (E, E), jnp.float32, -scale, scale),
        "bq": jax.random.uniform(keys[1], (E,), jnp.float32, -scale, scale),
        "wk": jax.random.uniform(keys[2], (E, E), jnp.float32, -scale, scale),
        "bk": jax.random.uniform(keys[3], (E,), jnp.float32, -scale, scale),
        "wv": jax.random.uniform(keys[4], (E, E), jnp.float32, -scale, scale),
        "bv": jax.random.uniform(keys[5], (E,), jnp.float32, -scale, scale),
        "wo": jax.random.uniform(keys[6], (E, E), jnp.float32, -scale, scale),
        "bo": jax.random.uniform(keys[7], (E,), jnp.float32, -scale, scale),
    }
    x = jax.random.normal(keys[8], (B, N, E), jnp.float32)

    out = multi_head_attention(x, params, num_heads=H)
    out = jax.block_until_ready(out)

    ref = _reference(x, params, num_heads=H)
    # bf16 MXU operands + approx reciprocal => compare with bf16-level tolerance.
    np.testing.assert_allclose(np.asarray(out), np.asarray(ref),
                               rtol=2e-2, atol=2e-2)

    print("KERNEL_OK")
</pallas_src>

<mosaic_0001>
module attributes {stable_mosaic.version = 11 : i64} {
  func.func @_mha_kernel(%arg0: i32, %arg1: memref<1x8x32xf32, #tpu.memory_space<vmem>>, %arg2: memref<32x1536xbf16, #tpu.memory_space<vmem>>, %arg3: memref<1x1536xf32, #tpu.memory_space<vmem>>, %arg4: memref<4x128x32xbf16, #tpu.memory_space<vmem>>, %arg5: memref<1x32xf32, #tpu.memory_space<vmem>>, %arg6: memref<1x8x32xf32, #tpu.memory_space<vmem>>) attributes {dimension_semantics = [#tpu.dimension_semantics<parallel>], iteration_bounds = array<i64: 2>, scalar_prefetch = 0 : i64, scratch_operands = 0 : i64, tpu.core_type = #tpu.core_type<tc>, window_params = [{transform_indices = @transform_0, window_bounds = array<i64: 1, 8, 32>}, {pipeline_mode = #tpu.pipeline_mode<synchronous>, transform_indices = @transform_1, window_bounds = array<i64: 32, 1536>}, {pipeline_mode = #tpu.pipeline_mode<synchronous>, transform_indices = @transform_2, window_bounds = array<i64: 1, 1536>}, {pipeline_mode = #tpu.pipeline_mode<synchronous>, transform_indices = @transform_3, window_bounds = array<i64: 4, 128, 32>}, {pipeline_mode = #tpu.pipeline_mode<synchronous>, transform_indices = @transform_4, window_bounds = array<i64: 1, 32>}, {transform_indices = @transform_5, window_bounds = array<i64: 1, 8, 32>}]} {
    %c0 = arith.constant 0 : index
    %c0_0 = arith.constant 0 : index
    %c0_1 = arith.constant 0 : index
    %0 = vector.load %arg1[%c0, %c0_0, %c0_1] : memref<1x8x32xf32, #tpu.memory_space<vmem>>, vector<1x8x32xf32>
    %1 = vector.shape_cast %0 : vector<1x8x32xf32> to vector<8x32xf32>
    %2 = arith.truncf %1 : vector<8x32xf32> to vector<8x32xbf16>
    %c0_2 = arith.constant 0 : index
    %c0_3 = arith.constant 0 : index
    %3 = vector.load %arg2[%c0_2, %c0_3] : memref<32x1536xbf16, #tpu.memory_space<vmem>>, vector<32x1536xbf16>
    %cst = arith.constant dense<0.000000e+00> : vector<8x1536xf32>
    %4 = tpu.matmul %2, %3, %cst {dimension_numbers = #tpu.dot_dimension_numbers<[1], [0], [0], [1], [0, 0, 1, 1], [], []>} : vector<8x32xbf16>, vector<32x1536xbf16>, vector<8x1536xf32> -> vector<8x1536xf32>
    %c0_4 = arith.constant 0 : index
    %c0_5 = arith.constant 0 : index
    %5 = vector.load %arg3[%c0_4, %c0_5] : memref<1x1536xf32, #tpu.memory_space<vmem>>, vector<1x1536xf32>
    %6 = vector.broadcast %5 : vector<1x1536xf32> to vector<8x1536xf32>
    %7 = arith.addf %4, %6 : vector<8x1536xf32>
    %cst_6 = arith.constant 0.000000e+00 : f32
    %8 = vector.broadcast %cst_6 : f32 to vector<8x32xf32>
    %9 = vector.extract_strided_slice %7 {offsets = [0, 0], sizes = [8, 128], strides = [1, 1]} : vector<8x1536xf32> to vector<8x128xf32>
    %cst_7 = arith.constant 0.176776692 : f32
    %10 = vector.broadcast %cst_7 : f32 to vector<8x128xf32>
    %11 = arith.mulf %9, %10 : vector<8x128xf32>
    %12 = arith.truncf %11 : vector<8x128xf32> to vector<8x128xbf16>
    %13 = vector.extract_strided_slice %7 {offsets = [0, 128], sizes = [8, 128], strides = [1, 1]} : vector<8x1536xf32> to vector<8x128xf32>
    %14 = arith.truncf %13 : vector<8x128xf32> to vector<8x128xbf16>
    %15 = vector.extract_strided_slice %7 {offsets = [0, 256], sizes = [8, 128], strides = [1, 1]} : vector<8x1536xf32> to vector<8x128xf32>
    %16 = arith.truncf %15 : vector<8x128xf32> to vector<8x128xbf16>
    %17 = vector.shape_cast %12 : vector<8x128xbf16> to vector<1x8x128xbf16>
    %18 = vector.shape_cast %14 : vector<8x128xbf16> to vector<1x8x128xbf16>
    %19 = vector.shape_cast %16 : vector<8x128xbf16> to vector<1x8x128xbf16>
    "tpu.trace_start"() <{level = 10 : i32, message = "bqd,bkd->bqk"}> : () -> ()
    %cst_8 = arith.constant dense<0.000000e+00> : vector<1x8x8xf32>
    %20 = tpu.matmul %17, %18, %cst_8 {dimension_numbers = #tpu.dot_dimension_numbers<[2], [2], [1], [1], [0, 0, 0, 1, 1, 1], [0], [0]>} : vector<1x8x128xbf16>, vector<1x8x128xbf16>, vector<1x8x8xf32> -> vector<1x8x8xf32>
    "tpu.trace_stop"() : () -> ()
    %cst_9 = arith.constant dense<0xFF800000> : vector<1x8xf32>
    %21 = vector.multi_reduction <maximumf>, %20, %cst_9 [2] : vector<1x8x8xf32> to vector<1x8xf32>
    %22 = vector.shape_cast %21 : vector<1x8xf32> to vector<1x8x1xf32>
    %23 = vector.broadcast %22 : vector<1x8x1xf32> to vector<1x8x8xf32>
    %24 = arith.subf %20, %23 : vector<1x8x8xf32>
    %25 = math.exp %24 : vector<1x8x8xf32>
    %cst_10 = arith.constant dense<0.000000e+00> : vector<1x8xf32>
    %26 = vector.multi_reduction <add>, %25, %cst_10 [2] : vector<1x8x8xf32> to vector<1x8xf32>
    %27 = vector.shape_cast %26 : vector<1x8xf32> to vector<1x8x1xf32>
    %28 = tpu.reciprocal %27 {approx = true} : vector<1x8x1xf32> -> vector<1x8x1xf32>
    %29 = vector.broadcast %28 : vector<1x8x1xf32> to vector<1x8x8xf32>
    %30 = arith.mulf %25, %29 : vector<1x8x8xf32>
    %31 = arith.truncf %30 : vector<1x8x8xf32> to vector<1x8x8xbf16>
    "tpu.trace_start"() <{level = 10 : i32, message = "bqk,bkd->bqd"}> : () -> ()
    %cst_11 = arith.constant dense<0.000000e+00> : vector<1x8x128xf32>
    %32 = tpu.matmul %31, %19, %cst_11 {dimension_numbers = #tpu.dot_dimension_numbers<[2], [1], [1], [2], [0, 0, 0, 1, 1, 2], [0], [0]>} : vector<1x8x8xbf16>, vector<1x8x128xbf16>, vector<1x8x128xf32> -> vector<1x8x128xf32>
    "tpu.trace_stop"() : () -> ()
    %33 = vector.shape_cast %32 : vector<1x8x128xf32> to vector<8x128xf32>
    %34 = arith.truncf %33 : vector<8x128xf32> to vector<8x128xbf16>
    %c0_12 = arith.constant 0 : index
    %c0_13 = arith.constant 0 : index
    %c0_14 = arith.constant 0 : index
    %35 = vector.load %arg4[%c0_12, %c0_13, %c0_14] : memref<4x128x32xbf16, #tpu.memory_space<vmem>>, vector<1x128x32xbf16>
    %36 = vector.shape_cast %35 : vector<1x128x32xbf16> to vector<128x32xbf16>
    %cst_15 = arith.constant dense<0.000000e+00> : vector<8x32xf32>
    %37 = tpu.matmul %34, %36, %cst_15 {dimension_numbers = #tpu.dot_dimension_numbers<[1], [0], [0], [1], [0, 0, 1, 1], [], []>} : vector<8x128xbf16>, vector<128x32xbf16>, vector<8x32xf32> -> vector<8x32xf32>
    %38 = arith.addf %8, %37 : vector<8x32xf32>
    %39 = vector.extract_strided_slice %7 {offsets = [0, 384], sizes = [8, 128], strides = [1, 1]} : vector<8x1536xf32> to vector<8x128xf32>
    %cst_16 = arith.constant 0.176776692 : f32
    %40 = vector.broadcast %cst_16 : f32 to vector<8x128xf32>
    %41 = arith.mulf %39, %40 : vector<8x128xf32>
    %42 = arith.truncf %41 : vector<8x128xf32> to vector<8x128xbf16>
    %43 = vector.extract_strided_slice %7 {offsets = [0, 512], sizes = [8, 128], strides = [1, 1]} : vector<8x1536xf32> to vector<8x128xf32>
    %44 = arith.truncf %43 : vector<8x128xf32> to vector<8x128xbf16>
    %45 = vector.extract_strided_slice %7 {offsets = [0, 640], sizes = [8, 128], strides = [1, 1]} : vector<8x1536xf32> to vector<8x128xf32>
    %46 = arith.truncf %45 : vector<8x128xf32> to vector<8x128xbf16>
    %47 = vector.shape_cast %42 : vector<8x128xbf16> to vector<1x8x128xbf16>
    %48 = vector.shape_cast %44 : vector<8x128xbf16> to vector<1x8x128xbf16>
    %49 = vector.shape_cast %46 : vector<8x128xbf16> to vector<1x8x128xbf16>
    "tpu.trace_start"() <{level = 10 : i32, message = "bqd,bkd->bqk"}> : () -> ()
    %cst_17 = arith.constant dense<0.000000e+00> : vector<1x8x8xf32>
    %50 = tpu.matmul %47, %48, %cst_17 {dimension_numbers = #tpu.dot_dimension_numbers<[2], [2], [1], [1], [0, 0, 0, 1, 1, 1], [0], [0]>} : vector<1x8x128xbf16>, vector<1x8x128xbf16>, vector<1x8x8xf32> -> vector<1x8x8xf32>
    "tpu.trace_stop"() : () -> ()
    %cst_18 = arith.constant dense<0xFF800000> : vector<1x8xf32>
    %51 = vector.multi_reduction <maximumf>, %50, %cst_18 [2] : vector<1x8x8xf32> to vector<1x8xf32>
    %52 = vector.shape_cast %51 : vector<1x8xf32> to vector<1x8x1xf32>
    %53 = vector.broadcast %52 : vector<1x8x1xf32> to vector<1x8x8xf32>
    %54 = arith.subf %50, %53 : vector<1x8x8xf32>
    %55 = math.exp %54 : vector<1x8x8xf32>
    %cst_19 = arith.constant dense<0.000000e+00> : vector<1x8xf32>
    %56 = vector.multi_reduction <add>, %55, %cst_19 [2] : vector<1x8x8xf32> to vector<1x8xf32>
    %57 = vector.shape_cast %56 : vector<1x8xf32> to vector<1x8x1xf32>
    %58 = tpu.reciprocal %57 {approx = true} : vector<1x8x1xf32> -> vector<1x8x1xf32>
    %59 = vector.broadcast %58 : vector<1x8x1xf32> to vector<1x8x8xf32>
    %60 = arith.mulf %55, %59 : vector<1x8x8xf32>
    %61 = arith.truncf %60 : vector<1x8x8xf32> to vector<1x8x8xbf16>
    "tpu.trace_start"() <{level = 10 : i32, message = "bqk,bkd->bqd"}> : () -> ()
    %cst_20 = arith.constant dense<0.000000e+00> : vector<1x8x128xf32>
    %62 = tpu.matmul %61, %49, %cst_20 {dimension_numbers = #tpu.dot_dimension_numbers<[2], [1], [1], [2], [0, 0, 0, 1, 1, 2], [0], [0]>} : vector<1x8x8xbf16>, vector<1x8x128xbf16>, vector<1x8x128xf32> -> vector<1x8x128xf32>
    "tpu.trace_stop"() : () -> ()
    %63 = vector.shape_cast %62 : vector<1x8x128xf32> to vector<8x128xf32>
    %64 = arith.truncf %63 : vector<8x128xf32> to vector<8x128xbf16>
    %c1 = arith.constant 1 : index
    %c0_21 = arith.constant 0 : index
    %c0_22 = arith.constant 0 : index
    %65 = vector.load %arg4[%c1, %c0_21, %c0_22] : memref<4x128x32xbf16, #tpu.memory_space<vmem>>, vector<1x128x32xbf16>
    %66 = vector.shape_cast %65 : vector<1x128x32xbf16> to vector<128x32xbf16>
    %cst_23 = arith.constant dense<0.000000e+00> : vector<8x32xf32>
    %67 = tpu.matmul %64, %66, %cst_23 {dimension_numbers = #tpu.dot_dimension_numbers<[1], [0], [0], [1], [0, 0, 1, 1], [], []>} : vector<8x128xbf16>, vector<128x32xbf16>, vector<8x32xf32> -> vector<8x32xf32>
    %68 = arith.addf %38, %67 : vector<8x32xf32>
    %69 = vector.extract_strided_slice %7 {offsets = [0, 768], sizes = [8, 128], strides = [1, 1]} : vector<8x1536xf32> to vector<8x128xf32>
    %cst_24 = arith.constant 0.176776692 : f32
    %70 = vector.broadcast %cst_24 : f32 to vector<8x128xf32>
    %71 = arith.mulf %69, %70 : vector<8x128xf32>
    %72 = arith.truncf %71 : vector<8x128xf32> to vector<8x128xbf16>
    %73 = vector.extract_strided_slice %7 {offsets = [0, 896], sizes = [8, 128], strides = [1, 1]} : vector<8x1536xf32> to vector<8x128xf32>
    %74 = arith.truncf %73 : vector<8x128xf32> to vector<8x128xbf16>
    %75 = vector.extract_strided_slice %7 {offsets = [0, 1024], sizes = [8, 128], strides = [1, 1]} : vector<8x1536xf32> to vector<8x128xf32>
    %76 = arith.truncf %75 : vector<8x128xf32> to vector<8x128xbf16>
    %77 = vector.shape_cast %72 : vector<8x128xbf16> to vector<1x8x128xbf16>
    %78 = vector.shape_cast %74 : vector<8x128xbf16> to vector<1x8x128xbf16>
    %79 = vector.shape_cast %76 : vector<8x128xbf16> to vector<1x8x128xbf16>
    "tpu.trace_start"() <{level = 10 : i32, message = "bqd,bkd->bqk"}> : () -> ()
    %cst_25 = arith.constant dense<0.000000e+00> : vector<1x8x8xf32>
    %80 = tpu.matmul %77, %78, %cst_25 {dimension_numbers = #tpu.dot_dimension_numbers<[2], [2], [1], [1], [0, 0, 0, 1, 1, 1], [0], [0]>} : vector<1x8x128xbf16>, vector<1x8x128xbf16>, vector<1x8x8xf32> -> vector<1x8x8xf32>
    "tpu.trace_stop"() : () -> ()
    %cst_26 = arith.constant dense<0xFF800000> : vector<1x8xf32>
    %81 = vector.multi_reduction <maximumf>, %80, %cst_26 [2] : vector<1x8x8xf32> to vector<1x8xf32>
    %82 = vector.shape_cast %81 : vector<1x8xf32> to vector<1x8x1xf32>
    %83 = vector.broadcast %82 : vector<1x8x1xf32> to vector<1x8x8xf32>
    %84 = arith.subf %80, %83 : vector<1x8x8xf32>
    %85 = math.exp %84 : vector<1x8x8xf32>
    %cst_27 = arith.constant dense<0.000000e+00> : vector<1x8xf32>
    %86 = vector.multi_reduction <add>, %85, %cst_27 [2] : vector<1x8x8xf32> to vector<1x8xf32>
    %87 = vector.shape_cast %86 : vector<1x8xf32> to vector<1x8x1xf32>
    %88 = tpu.reciprocal %87 {approx = true} : vector<1x8x1xf32> -> vector<1x8x1xf32>
    %89 = vector.broadcast %88 : vector<1x8x1xf32> to vector<1x8x8xf32>
    %90 = arith.mulf %85, %89 : vector<1x8x8xf32>
    %91 = arith.truncf %90 : vector<1x8x8xf32> to vector<1x8x8xbf16>
    "tpu.trace_start"() <{level = 10 : i32, message = "bqk,bkd->bqd"}> : () -> ()
    %cst_28 = arith.constant dense<0.000000e+00> : vector<1x8x128xf32>
    %92 = tpu.matmul %91, %79, %cst_28 {dimension_numbers = #tpu.dot_dimension_numbers<[2], [1], [1], [2], [0, 0, 0, 1, 1, 2], [0], [0]>} : vector<1x8x8xbf16>, vector<1x8x128xbf16>, vector<1x8x128xf32> -> vector<1x8x128xf32>
    "tpu.trace_stop"() : () -> ()
    %93 = vector.shape_cast %92 : vector<1x8x128xf32> to vector<8x128xf32>
    %94 = arith.truncf %93 : vector<8x128xf32> to vector<8x128xbf16>
    %c2 = arith.constant 2 : index
    %c0_29 = arith.constant 0 : index
    %c0_30 = arith.constant 0 : index
    %95 = vector.load %arg4[%c2, %c0_29, %c0_30] : memref<4x128x32xbf16, #tpu.memory_space<vmem>>, vector<1x128x32xbf16>
    %96 = vector.shape_cast %95 : vector<1x128x32xbf16> to vector<128x32xbf16>
    %cst_31 = arith.constant dense<0.000000e+00> : vector<8x32xf32>
    %97 = tpu.matmul %94, %96, %cst_31 {dimension_numbers = #tpu.dot_dimension_numbers<[1], [0], [0], [1], [0, 0, 1, 1], [], []>} : vector<8x128xbf16>, vector<128x32xbf16>, vector<8x32xf32> -> vector<8x32xf32>
    %98 = arith.addf %68, %97 : vector<8x32xf32>
    %99 = vector.extract_strided_slice %7 {offsets = [0, 1152], sizes = [8, 128], strides = [1, 1]} : vector<8x1536xf32> to vector<8x128xf32>
    %cst_32 = arith.constant 0.176776692 : f32
    %100 = vector.broadcast %cst_32 : f32 to vector<8x128xf32>
    %101 = arith.mulf %99, %100 : vector<8x128xf32>
    %102 = arith.truncf %101 : vector<8x128xf32> to vector<8x128xbf16>
    %103 = vector.extract_strided_slice %7 {offsets = [0, 1280], sizes = [8, 128], strides = [1, 1]} : vector<8x1536xf32> to vector<8x128xf32>
    %104 = arith.truncf %103 : vector<8x128xf32> to vector<8x128xbf16>
    %105 = vector.extract_strided_slice %7 {offsets = [0, 1408], sizes = [8, 128], strides = [1, 1]} : vector<8x1536xf32> to vector<8x128xf32>
    %106 = arith.truncf %105 : vector<8x128xf32> to vector<8x128xbf16>
    %107 = vector.shape_cast %102 : vector<8x128xbf16> to vector<1x8x128xbf16>
    %108 = vector.shape_cast %104 : vector<8x128xbf16> to vector<1x8x128xbf16>
    %109 = vector.shape_cast %106 : vector<8x128xbf16> to vector<1x8x128xbf16>
    "tpu.trace_start"() <{level = 10 : i32, message = "bqd,bkd->bqk"}> : () -> ()
    %cst_33 = arith.constant dense<0.000000e+00> : vector<1x8x8xf32>
    %110 = tpu.matmul %107, %108, %cst_33 {dimension_numbers = #tpu.dot_dimension_numbers<[2], [2], [1], [1], [0, 0, 0, 1, 1, 1], [0], [0]>} : vector<1x8x128xbf16>, vector<1x8x128xbf16>, vector<1x8x8xf32> -> vector<1x8x8xf32>
    "tpu.trace_stop"() : () -> ()
    %cst_34 = arith.constant dense<0xFF800000> : vector<1x8xf32>
    %111 = vector.multi_reduction <maximumf>, %110, %cst_34 [2] : vector<1x8x8xf32> to vector<1x8xf32>
    %112 = vector.shape_cast %111 : vector<1x8xf32> to vector<1x8x1xf32>
    %113 = vector.broadcast %112 : vector<1x8x1xf32> to vector<1x8x8xf32>
    %114 = arith.subf %110, %113 : vector<1x8x8xf32>
    %115 = math.exp %114 : vector<1x8x8xf32>
    %cst_35 = arith.constant dense<0.000000e+00> : vector<1x8xf32>
    %116 = vector.multi_reduction <add>, %115, %cst_35 [2] : vector<1x8x8xf32> to vector<1x8xf32>
    %117 = vector.shape_cast %116 : vector<1x8xf32> to vector<1x8x1xf32>
    %118 = tpu.reciprocal %117 {approx = true} : vector<1x8x1xf32> -> vector<1x8x1xf32>
    %119 = vector.broadcast %118 : vector<1x8x1xf32> to vector<1x8x8xf32>
    %120 = arith.mulf %115, %119 : vector<1x8x8xf32>
    %121 = arith.truncf %120 : vector<1x8x8xf32> to vector<1x8x8xbf16>
    "tpu.trace_start"() <{level = 10 : i32, message = "bqk,bkd->bqd"}> : () -> ()
    %cst_36 = arith.constant dense<0.000000e+00> : vector<1x8x128xf32>
    %122 = tpu.matmul %121, %109, %cst_36 {dimension_numbers = #tpu.dot_dimension_numbers<[2], [1], [1], [2], [0, 0, 0, 1, 1, 2], [0], [0]>} : vector<1x8x8xbf16>, vector<1x8x128xbf16>, vector<1x8x128xf32> -> vector<1x8x128xf32>
    "tpu.trace_stop"() : () -> ()
    %123 = vector.shape_cast %122 : vector<1x8x128xf32> to vector<8x128xf32>
    %124 = arith.truncf %123 : vector<8x128xf32> to vector<8x128xbf16>
    %c3 = arith.constant 3 : index
    %c0_37 = arith.constant 0 : index
    %c0_38 = arith.constant 0 : index
    %125 = vector.load %arg4[%c3, %c0_37, %c0_38] : memref<4x128x32xbf16, #tpu.memory_space<vmem>>, vector<1x128x32xbf16>
    %126 = vector.shape_cast %125 : vector<1x128x32xbf16> to vector<128x32xbf16>
    %cst_39 = arith.constant dense<0.000000e+00> : vector<8x32xf32>
    %127 = tpu.matmul %124, %126, %cst_39 {dimension_numbers = #tpu.dot_dimension_numbers<[1], [0], [0], [1], [0, 0, 1, 1], [], []>} : vector<8x128xbf16>, vector<128x32xbf16>, vector<8x32xf32> -> vector<8x32xf32>
    %128 = arith.addf %98, %127 : vector<8x32xf32>
    %c0_40 = arith.constant 0 : index
    %c0_41 = arith.constant 0 : index
    %129 = vector.load %arg5[%c0_40, %c0_41] : memref<1x32xf32, #tpu.memory_space<vmem>>, vector<1x32xf32>
    %130 = vector.broadcast %129 : vector<1x32xf32> to vector<8x32xf32>
    %131 = arith.addf %128, %130 : vector<8x32xf32>
    %132 = vector.shape_cast %131 : vector<8x32xf32> to vector<1x8x32xf32>
    %c0_42 = arith.constant 0 : index
    %c0_43 = arith.constant 0 : index
    %c0_44 = arith.constant 0 : index
    %133 = vector.load %arg6[%c0_42, %c0_43, %c0_44] : memref<1x8x32xf32, #tpu.memory_space<vmem>>, vector<1x8x32xf32>
    tpu.vector_store %arg6[%c0_42, %c0_43, %c0_44], %132 {strides = array<i32>} : memref<1x8x32xf32, #tpu.memory_space<vmem>>, vector<1x8x32xf32>,
    return
  }
  func.func @transform_0(%arg0: i32) -> (i32, i32, i32) {
    %c0_i32 = arith.constant 0 : i32
    %c0_i32_0 = arith.constant 0 : i32
    %c0_i32_1 = arith.constant 0 : i32
    return %arg0, %c0_i32, %c0_i32_0 : i32, i32, i32
  }
  func.func @transform_1(%arg0: i32) -> (i32, i32) {
    %c0_i32 = arith.constant 0 : i32
    %c0_i32_0 = arith.constant 0 : i32
    %c0_i32_1 = arith.constant 0 : i32
    return %c0_i32, %c0_i32_0 : i32, i32
  }
  func.func @transform_2(%arg0: i32) -> (i32, i32) {
    %c0_i32 = arith.constant 0 : i32
    %c0_i32_0 = arith.constant 0 : i32
    %c0_i32_1 = arith.constant 0 : i32
    return %c0_i32, %c0_i32_0 : i32, i32
  }
  func.func @transform_3(%arg0: i32) -> (i32, i32, i32) {
    %c0_i32 = arith.constant 0 : i32
    %c0_i32_0 = arith.constant 0 : i32
    %c0_i32_1 = arith.constant 0 : i32
    %c0_i32_2 = arith.constant 0 : i32
    return %c0_i32, %c0_i32_0, %c0_i32_1 : i32, i32, i32
  }
  func.func @transform_4(%arg0: i32) -> (i32, i32) {
    %c0_i32 = arith.constant 0 : i32
    %c0_i32_0 = arith.constant 0 : i32
    %c0_i32_1 = arith.constant 0 : i32
    return %c0_i32, %c0_i32_0 : i32, i32
  }
  func.func @transform_5(%arg0: i32) -> (i32, i32, i32) {
    %c0_i32 = arith.constant 0 : i32
    %c0_i32_0 = arith.constant 0 : i32
    %c0_i32_1 = arith.constant 0 : i32
    return %arg0, %c0_i32, %c0_i32_0 : i32, i32, i32
  }
}

</mosaic_0001>

<llo_original>
// kernel: tpu_custom_call.1
$region0: #{tpu_custom_call.1}
  #allocation0 [shape = 'u32[]', space=smem, size = 0x4, offset = 0x4, fixed_abs, tag = 'smem constant byte address 0x4 - core index']
  #allocation1 [shape = 'u32[144,128]{1,0:T(1,128)}', space=vmem, size = 0x12000, scoped, tag = 'internal scratch']
  %s0 = inlined_call_operand.vmem [shape: f32[2,8,32], index: 0, kind: input, shape index: {}]
  %s1 = inlined_call_operand.vmem [shape: bf16[32,1536], index: 1, kind: input, shape index: {}]
  %s2 = inlined_call_operand.vmem [shape: f32[1,1536], index: 2, kind: input, shape index: {}]
  %s3 = inlined_call_operand.vmem [shape: bf16[4,128,32], index: 3, kind: input, shape index: {}]
  %s4 = inlined_call_operand.vmem [shape: f32[1,32], index: 4, kind: input, shape index: {}]
  %s5 = inlined_call_operand.hbm [shape: f32[2,8,32], index: 5, kind: output, shape index: {}]
  %s6 = sld [smem:[#allocation0]]
  $region53: #{tpu_custom_call.1} parent=0
    _
  %s8 = ssub.s32 1, %s6
  %s9 = scalar_select 0, %s8, %s6
  $region1: #{tpu_custom_call.1} parent=0
    #allocation2 [shape = 'u8[8192]{0}', space=vmem, size = 0x2000, scoped, tag = 'output window, operand 0']
    #allocation3 [shape = 's32[2]{0}', space=sflag, size = 0x8, scoped, tag = 'scoped memory for tpu_custom_call.1']
    %10 = vsyncpa [#allocation3], 0
    %s11 = scalar_lea.sflag [#allocation3], 1
    %12 = vsyncpa %s11, 0
    loop: start=0, step=1, limit=4
    $region2: #{tpu_custom_call.1} parent=1 // loop_pre_header
      _
    $region3: #{tpu_custom_call.1} parent=1 // loop_header
      %s14 = sphi 0, %s18
      %p15 = scmp.ge.s32.totalorder %s14, 4
      %s24 = sphi 0, %s26
      %s27 = sphi 0, %s24
      %s28 = sphi 0, %s27
      %s44 = sphi 0, %s28
      %s48 = sphi 0, %s48
      %s50 = sphi 0, %s48
      %s51 = sphi 0, %s50
      %s65 = sphi 0, %s51
      %s69 = sphi 0, %s69
      %s71 = sphi 0, %s69
      %s72 = sphi 0, %s71
      %s86 = sphi 0, %s72
      %s90 = sphi 0, %s90
      %s92 = sphi 0, %s90
      %s93 = sphi 0, %s92
      %s107 = sphi 0, %s93
      %s111 = sphi 0, %s111
      %s113 = sphi 0, %s111
      %s114 = sphi 0, %s113
      %s128 = sphi 0, %s114
      %s134 = sphi 0, %s136
      %s137 = sphi 0, %s134
      %s138 = sphi 0, %s137
      %s154 = sphi 0, %s138
    $region4: #{tpu_custom_call.1} parent=1 // loop_header_branch
      %17 = sbr.rel (%p15) target = $region8
    $region5: #{tpu_custom_call.1} parent=1 // loop_body
      %s19 = ssub.s32 %s14, 1
      %s20 = ssub.s32 %s14, 2
      %s21 = sadd.s32 %s14, 1
      %s22 = ssub.s32 %s14, %s21
      %p23 = scmp.eq.s32.totalorder %s22, 0
      %s25 = sadd.s32 %s24, 1
      %s26 = scalar_select %p23, %s24, %s25
      %p29 = pneg %p23
      %p30 = scmp.eq.s32.totalorder %s14, 1
      %p31 = por %p29, %p30
      %p32 = scmp.ne.s32.totalorder %s24, %s27
      %p33 = scmp.eq.s32.totalorder %s14, 0
      %p34 = por %p32, %p33
      %p35 = scmp.ne.s32.totalorder %s24, %s27
      %p36 = scmp.eq.s32.totalorder %s19, 1
      %p37 = por %p35, %p36
      %p38 = scmp.ne.s32.totalorder %s27, %s28
      %p39 = scmp.eq.s32.totalorder %s19, 0
      %p40 = por %p38, %p39
      %p41 = scmp.ne.s32.totalorder %s27, %s28
      %p42 = scmp.eq.s32.totalorder %s20, 1
      %p43 = por %p41, %p42
      %p45 = scmp.ne.s32.totalorder %s28, %s44
      %p46 = scmp.eq.s32.totalorder %s20, 0
      %p47 = por %p45, %p46
      %s49 = sadd.s32 %s48, 1
      %p52 = scmp.eq.s32.totalorder %s14, 1
      %p53 = scmp.ne.s32.totalorder %s48, %s50
      %p54 = scmp.eq.s32.totalorder %s14, 0
      %p55 = por %p53, %p54
      %p56 = scmp.ne.s32.totalorder %s48, %s50
      %p57 = scmp.eq.s32.totalorder %s19, 1
      %p58 = por %p56, %p57
      %p59 = scmp.ne.s32.totalorder %s50, %s51
      %p60 = scmp.eq.s32.totalorder %s19, 0
      %p61 = por %p59, %p60
      %p62 = scmp.ne.s32.totalorder %s50, %s51
      %p63 = scmp.eq.s32.totalorder %s20, 1
      %p64 = por %p62, %p63
      %p66 = scmp.ne.s32.totalorder %s51, %s65
      %p67 = scmp.eq.s32.totalorder %s20, 0
      %p68 = por %p66, %p67
      %s70 = sadd.s32 %s69, 1
      %p73 = scmp.eq.s32.totalorder %s14, 1
      %p74 = scmp.ne.s32.totalorder %s69, %s71
      %p75 = scmp.eq.s32.totalorder %s14, 0
      %p76 = por %p74, %p75
      %p77 = scmp.ne.s32.totalorder %s69, %s71
      %p78 = scmp.eq.s32.totalorder %s19, 1
      %p79 = por %p77, %p78
      %p80 = scmp.ne.s32.totalorder %s71, %s72
      %p81 = scmp.eq.s32.totalorder %s19, 0
      %p82 = por %p80, %p81
      %p83 = scmp.ne.s32.totalorder %s71, %s72
      %p84 = scmp.eq.s32.totalorder %s20, 1
      %p85 = por %p83, %p84
      %p87 = scmp.ne.s32.totalorder %s72, %s86
      %p88 = scmp.eq.s32.totalorder %s20, 0
      %p89 = por %p87, %p88
      %s91 = sadd.s32 %s90, 1
      %p94 = scmp.eq.s32.totalorder %s14, 1
      %p95 = scmp.ne.s32.totalorder %s90, %s92
      %p96 = scmp.eq.s32.totalorder %s14, 0
      %p97 = por %p95, %p96
      %p98 = scmp.ne.s32.totalorder %s90, %s92
      %p99 = scmp.eq.s32.totalorder %s19, 1
      %p100 = por %p98, %p99
      %p101 = scmp.ne.s32.totalorder %s92, %s93
      %p102 = scmp.eq.s32.totalorder %s19, 0
      %p103 = por %p101, %p102
      %p104 = scmp.ne.s32.totalorder %s92, %s93
      %p105 = scmp.eq.s32.totalorder %s20, 1
      %p106 = por %p104, %p105
      %p108 = scmp.ne.s32.totalorder %s93, %s107
      %p109 = scmp.eq.s32.totalorder %s20, 0
      %p110 = por %p108, %p109
      %s112 = sadd.s32 %s111, 1
      %p115 = scmp.eq.s32.totalorder %s14, 1
      %p116 = scmp.ne.s32.totalorder %s111, %s113
      %p117 = scmp.eq.s32.totalorder %s14, 0
      %p118 = por %p116, %p117
      %p119 = scmp.ne.s32.totalorder %s111, %s113
      %p120 = scmp.eq.s32.totalorder %s19, 1
      %p121 = por %p119, %p120
      %p122 = scmp.ne.s32.totalorder %s113, %s114
      %p123 = scmp.eq.s32.totalorder %s19, 0
      %p124 = por %p122, %p123
      %p125 = scmp.ne.s32.totalorder %s113, %s114
      %p126 = scmp.eq.s32.totalorder %s20, 1
      %p127 = por %p125, %p126
      %p129 = scmp.ne.s32.totalorder %s114, %s128
      %p130 = scmp.eq.s32.totalorder %s20, 0
      %p131 = por %p129, %p130
      %s132 = ssub.s32 %s14, %s21
      %p133 = scmp.eq.s32.totalorder %s132, 0
      %s135 = sadd.s32 %s134, 1
      %s136 = scalar_select %p133, %s134, %s135
      %p139 = pneg %p133
      %p140 = scmp.eq.s32.totalorder %s14, 1
      %p141 = por %p139, %p140
      %p142 = scmp.ne.s32.totalorder %s134, %s137
      %p143 = scmp.eq.s32.totalorder %s14, 0
      %p144 = por %p142, %p143
      %p145 = scmp.ne.s32.totalorder %s134, %s137
      %p146 = scmp.eq.s32.totalorder %s19, 1
      %p147 = por %p145, %p146
      %p148 = scmp.ne.s32.totalorder %s137, %s138
      %p149 = scmp.eq.s32.totalorder %s19, 0
      %p150 = por %p148, %p149
      %p151 = scmp.ne.s32.totalorder %s137, %s138
      %p152 = scmp.eq.s32.totalorder %s20, 1
      %p153 = por %p151, %p152
      %p155 = scmp.ne.s32.totalorder %s138, %s154
      %p156 = scmp.eq.s32.totalorder %s20, 0
      %p157 = por %p155, %p156
      %p158 = scmp.le.s32.totalorder 1, %s14
      %p159 = scmp.lt.s32.totalorder %s14, 3
      %p160 = pnand %p158, %p159
      %p161 = pneg %p160
      // Predicated region
      $region9: #{tpu_custom_call.1} parent=5 // pred_check
        _
      $region10: #{tpu_custom_call.1} parent=5 // pred_check_branch
        %163 = sbr.rel (%p160) target = $region12
      $region11: #{tpu_custom_call.1} parent=5 // pred_region
        %s164 = ssub.s32 %s14, 1
        // Predicated region
        $region13: #{tpu_custom_call.1} parent=11 // pred_check
          %p165 = pneg %p61
        $region14: #{tpu_custom_call.1} parent=11 // pred_check_branch
          %167 = sbr.rel (%p165) target = $region16
        $region15: #{tpu_custom_call.1} parent=11 // pred_region
          _
        $region16: #{tpu_custom_call.1} parent=11 // pred_fallthru
          _
        // Predicated region
        $region17: #{tpu_custom_call.1} parent=11 // pred_check
          %p168 = pneg %p82
        $region18: #{tpu_custom_call.1} parent=11 // pred_check_branch
          %170 = sbr.rel (%p168) target = $region20
        $region19: #{tpu_custom_call.1} parent=11 // pred_region
          _
        $region20: #{tpu_custom_call.1} parent=11 // pred_fallthru
          _
        // Predicated region
        $region21: #{tpu_custom_call.1} parent=11 // pred_check
          %p171 = pneg %p103
        $region22: #{tpu_custom_call.1} parent=11 // pred_check_branch
          %173 = sbr.rel (%p171) target = $region24
        $region23: #{tpu_custom_call.1} parent=11 // pred_region
          _
        $region24: #{tpu_custom_call.1} parent=11 // pred_fallthru
          _
        // Predicated region
        $region25: #{tpu_custom_call.1} parent=11 // pred_check
          %p174 = pneg %p124
        $region26: #{tpu_custom_call.1} parent=11 // pred_check_branch
          %176 = sbr.rel (%p174) target = $region28
        $region27: #{tpu_custom_call.1} parent=11 // pred_region
          _
        $region28: #{tpu_custom_call.1} parent=11 // pred_fallthru
          _
      $region12: #{tpu_custom_call.1} parent=5 // pred_fallthru
        _
      %p177 = scmp.lt.s32.totalorder %s14, 2
      // Predicated region
      $region29: #{tpu_custom_call.1} parent=5 // pred_check
        %p178 = pneg %p177
      $region30: #{tpu_custom_call.1} parent=5 // pred_check_branch
        %180 = sbr.rel (%p178) target = $region32
      $region31: #{tpu_custom_call.1} parent=5 // pred_region
        // Predicated region
        $region33: #{tpu_custom_call.1} parent=31 // pred_check
          %p181 = pneg %p34
        $region34: #{tpu_custom_call.1} parent=31 // pred_check_branch
          %183 = sbr.rel (%p181) target = $region36
        $region35: #{tpu_custom_call.1} parent=31 // pred_region
          %p184 = scmp.lt.s32.totalorder %s14, 1
          %s185 = scalar_select %p184, %s14, 1
          %s186 = smul.addr %s185, 8
          %s187 = scalar_lea.vmem %s0, %s186
        $region36: #{tpu_custom_call.1} parent=31 // pred_fallthru
          _
      $region32: #{tpu_custom_call.1} parent=5 // pred_fallthru
        _
      %p188 = scmp.le.s32.totalorder 1, %s14
      %p189 = scmp.lt.s32.totalorder %s14, 3
      %p190 = pnand %p188, %p189
      %p191 = pneg %p190
      // Predicated region
      $region37: #{tpu_custom_call.1} parent=5 // pred_check
        _
      $region38: #{tpu_custom_call.1} parent=5 // pred_check_branch
        %193 = sbr.rel (%p190) target = $region40
      $region39: #{tpu_custom_call.1} parent=5 // pred_region
        %s194 = ssub.s32 %s14, 1
        %p195 = scmp.lt.s32.totalorder %s19, 1
        %s196 = scalar_select %p195, %s19, 1
        %s197 = smul.addr %s196, 8
        %s198 = scalar_lea.vmem %s0, %s197
        %p199 = pneg %p40
        %p200 = pneg %p37
        %p201 = pneg %p61
        %p202 = pneg %p58
        %p203 = pneg %p82
        %p204 = pneg %p79
        %p205 = pneg %p103
        %p206 = pneg %p100
        %p207 = pneg %p124
        %p208 = pneg %p121
        %p209 = pneg %p150
        %p210 = pneg %p147
        %s211 = sand.u32 %s137, 1
        %s212 = scalar_lea.sflag [#allocation3], %s211
        %s213 = sand.u32 %s137, 1
        %s214 = smul.addr %s213, 8
        %s215 = scalar_lea.vmem [#allocation2], %s214
        %p216 = scmp.lt.s32.totalorder %s19, 1
        %s217 = scalar_select %p216, %s19, 1
        %s218 = smul.addr %s217, 8
        %s219 = scalar_lea.vmem %s0, %s218
        %v221 = vld [vmem:[%s219] sm:$0xff]
        %v222 = vpack.c.bf16 %v221, %v221
        %v223 = vld [vmem:[%s1] sm:$0xff]
        %v224 = vld [vmem:[%s1 + $0x8] sm:$0xff]
        %v225 = vld [vmem:[%s1 + $0x10] sm:$0xff]
        %v226 = vld [vmem:[%s1 + $0x18] sm:$0xff]
        %v227 = vld [vmem:[%s1 + $0x20] sm:$0xff]
        %v228 = vld [vmem:[%s1 + $0x28] sm:$0xff]
        %v229 = vld [vmem:[%s1 + $0x30] sm:$0xff]
        %v230 = vld [vmem:[%s1 + $0x38] sm:$0xff]
        %v231 = vld [vmem:[%s1 + $0x40] sm:$0xff]
        %v232 = vld [vmem:[%s1 + $0x48] sm:$0xff]
        %v233 = vld [vmem:[%s1 + $0x50] sm:$0xff]
        %v234 = vld [vmem:[%s1 + $0x58] sm:$0xff]
        %v235 = vld [vmem:[%s1 + $0x60] sm:$0xff]
        %v236 = vld [vmem:[%s1 + $0x68] sm:$0xff]
        %v237 = vld [vmem:[%s1 + $0x70] sm:$0xff]
        %v238 = vld [vmem:[%s1 + $0x78] sm:$0xff]
        %v239 = vld [vmem:[%s1 + $0x80] sm:$0xff]
        %v240 = vld [vmem:[%s1 + $0x88] sm:$0xff]
        %v241 = vld [vmem:[%s1 + $0x90] sm:$0xff]
        %v242 = vld [vmem:[%s1 + $0x98] sm:$0xff]
        %v243 = vld [vmem:[%s1 + $0xa0] sm:$0xff]
        %v244 = vld [vmem:[%s1 + $0xa8] sm:$0xff]
        %v245 = vld [vmem:[%s1 + $0xb0] sm:$0xff]
        %v246 = vld [vmem:[%s1 + $0xb8] sm:$0xff]
        %v247 = vld [vmem:[%s2] sm:$0xff]
        %v248 = vld [vmem:[%s2 + $0x8] sm:$0xf]
        %v251 = vlaneseq
        %v252 = vshrl.u32 %v251, 7
        %v253 = vsub.s32 0, %v252
        %v254 = vrot.slane %v247, %v253
        %v255 = vlaneseq
        %v256 = vshrl.u32 %v255, 7
        %v257 = vsub.s32 1, %v256
        %v258 = vrot.slane %v247, %v257
        %v259 = vlaneseq
        %v260 = vshrl.u32 %v259, 7
        %v261 = vsub.s32 2, %v260
        %v262 = vrot.slane %v247, %v261
        %v263 = vlaneseq
        %v264 = vshrl.u32 %v263, 7
        %v265 = vsub.s32 3, %v264
        %v266 = vrot.slane %v247, %v265
        %v267 = vlaneseq
        %v268 = vshrl.u32 %v267, 7
        %v269 = vsub.s32 4, %v268
        %v270 = vrot.slane %v247, %v269
        %v271 = vlaneseq
        %v272 = vshrl.u32 %v271, 7
        %v273 = vsub.s32 5, %v272
        %v274 = vrot.slane %v247, %v273
        %v275 = vlaneseq
        %v276 = vshrl.u32 %v275, 7
        %v277 = vsub.s32 6, %v276
        %v278 = vrot.slane %v247, %v277
        %v279 = vlaneseq
        %v280 = vshrl.u32 %v279, 7
        %v281 = vsub.s32 7, %v280
        %v282 = vrot.slane %v247, %v281
        %v283 = vlaneseq
        %v284 = vshrl.u32 %v283, 7
        %v285 = vsub.s32 0, %v284
        %v286 = vrot.slane %v248, %v285
        %v287 = vlaneseq
        %v288 = vshrl.u32 %v287, 7
        %v289 = vsub.s32 1, %v288
        %v290 = vrot.slane %v248, %v289
        %v291 = vlaneseq
        %v292 = vshrl.u32 %v291, 7
        %v293 = vsub.s32 2, %v292
        %v294 = vrot.slane %v248, %v293
        %v295 = vlaneseq
        %v296 = vshrl.u32 %v295, 7
        %v297 = vsub.s32 3, %v296
        %v298 = vrot.slane %v248, %v297
        %v335 = vunpack.c.l.b16 %v223
        %v336 = vunpack.c.h.b16 %v223
        %v337 = vunpack.c.l.b16 %v224
        %v338 = vunpack.c.h.b16 %v224
        %v339 = vunpack.c.l.b16 %v225
        %v340 = vunpack.c.h.b16 %v225
        %v341 = vunpack.c.l.b16 %v226
        %v342 = vunpack.c.h.b16 %v226
        %v343 = vunpack.c.l.b16 %v227
        %v344 = vunpack.c.h.b16 %v227
        %v345 = vunpack.c.l.b16 %v228
        %v346 = vunpack.c.h.b16 %v228
        %v347 = vunpack.c.l.b16 %v229
        %v348 = vunpack.c.h.b16 %v229
        %v349 = vunpack.c.l.b16 %v230
        %v350 = vunpack.c.h.b16 %v230
        %v351 = vunpack.c.l.b16 %v231
        %v352 = vunpack.c.h.b16 %v231
        %v353 = vunpack.c.l.b16 %v232
        %v354 = vunpack.c.h.b16 %v232
        %v355 = vunpack.c.l.b16 %v233
        %v356 = vunpack.c.h.b16 %v233
        %v357 = vunpack.c.l.b16 %v234
        %v358 = vunpack.c.h.b16 %v234
        %v359 = vunpack.c.l.b16 %v235
        %v360 = vunpack.c.h.b16 %v235
        %v361 = vunpack.c.l.b16 %v236
        %v362 = vunpack.c.h.b16 %v236
        %v363 = vunpack.c.l.b16 %v237
        %v364 = vunpack.c.h.b16 %v237
        %v365 = vunpack.c.l.b16 %v238
        %v366 = vunpack.c.h.b16 %v238
        %v367 = vunpack.c.l.b16 %v239
        %v368 = vunpack.c.h.b16 %v239
        %v369 = vunpack.c.l.b16 %v240
        %v370 = vunpack.c.h.b16 %v240
        %v371 = vunpack.c.l.b16 %v241
        %v372 = vunpack.c.h.b16 %v241
        %v373 = vunpack.c.l.b16 %v242
        %v374 = vunpack.c.h.b16 %v242
        %v375 = vunpack.c.l.b16 %v243
        %v376 = vunpack.c.h.b16 %v243
        %v377 = vunpack.c.l.b16 %v244
        %v378 = vunpack.c.h.b16 %v244
        %v379 = vunpack.c.l.b16 %v245
        %v380 = vunpack.c.h.b16 %v245
        %v381 = vunpack.c.l.b16 %v246
        %v382 = vunpack.c.h.b16 %v246
        %v383 = vpack.c.b16 %v347, %v335
        %v384 = vpack.c.b16 %v348, %v336
        %v385 = vpack.c.b16 %v349, %v337
        %v386 = vpack.c.b16 %v350, %v338
        %v387 = vpack.c.b16 %v351, %v339
        %v388 = vpack.c.b16 %v352, %v340
        %v389 = vpack.c.b16 %v353, %v341
        %v390 = vpack.c.b16 %v354, %v342
        %v391 = vpack.c.b16 %v355, %v343
        %v392 = vpack.c.b16 %v356, %v344
        %v393 = vpack.c.b16 %v357, %v345
        %v394 = vpack.c.b16 %v358, %v346
        %v395 = vpack.c.b16 %v371, %v359
        %v396 = vpack.c.b16 %v372, %v360
        %v397 = vpack.c.b16 %v373, %v361
        %v398 = vpack.c.b16 %v374, %v362
        %v399 = vpack.c.b16 %v375, %v363
        %v400 = vpack.c.b16 %v376, %v364
        %v401 = vpack.c.b16 %v377, %v365
        %v402 = vpack.c.b16 %v378, %v366
        %v403 = vpack.c.b16 %v379, %v367
        %v404 = vpack.c.b16 %v380, %v368
        %v405 = vpack.c.b16 %v381, %v369
        %v406 = vpack.c.b16 %v382, %v370
        %vm431 = vcmask 261120
        %v433 = vsel %vm431, %v222, 0
        %435 = vmatprep.subr.bf16.mxu0 %v384
        %436 = vmatpush1.bf16.msra.mxu0 %v383
        %437 = vmatprep.subr.bf16.mxu0 %v396
        %438 = vmatpush1.bf16.msra.mxu0 %v395
        %439 = vmatprep.subr.bf16.mxu0 0
        %440 = vmatpush1.bf16.msra.mxu0 0
        %441 = vmatprep.subr.bf16.mxu0 0
        %442 = vmatpush1.bf16.msra.mxu0 0
        %443 = vmatprep.subr.bf16.mxu0 0
        %444 = vmatpush1.bf16.msra.mxu0 0
        %445 = vmatprep.subr.bf16.mxu0 0
        %446 = vmatpush1.bf16.msra.mxu0 0
        %447 = vmatprep.subr.bf16.mxu0 0
        %448 = vmatpush1.bf16.msra.mxu0 0
        %449 = vmatprep.subr.bf16.mxu0 0
        %450 = vmatpush1.bf16.msra.mxu0 0
        %451 = vmatprep.subr.bf16.mxu0 0
        %452 = vmatpush1.bf16.msra.mxu0 0
        %453 = vmatprep.subr.bf16.mxu0 0
        %454 = vmatpush1.bf16.msra.mxu0 0
        %455 = vmatprep.subr.bf16.mxu0 0
        %456 = vmatpush1.bf16.msra.mxu0 0
        %457 = vmatprep.subr.bf16.mxu0 0
        %458 = vmatpush1.bf16.msra.mxu0 0
        %459 = vmatprep.subr.bf16.mxu0 0
        %460 = vmatpush1.bf16.msra.mxu0 0
        %461 = vmatprep.subr.bf16.mxu0 0
        %462 = vmatpush1.bf16.msra.mxu0 0
        %463 = vmatprep.subr.bf16.mxu0 0
        %464 = vmatpush1.bf16.msra.mxu0 0
        %465 = vmatprep.subr.bf16.mxu0 0
        %466 = vmatpush1.bf16.msra.mxu0 0
        %467 = vmatprep.mubr.bf16.mxu0 0
        %468 = vmatmul.mubr.bf16.gmra.mrb[0].mxu0 %v433
        %v469 = vpop.f32.mrb[0].mxu0
        %v470 = vadd.f32 %v254, %v469
        %v471 = vpop.f32.mrb[0].mxu0
        %v472 = vadd.f32 %v258, %v471
        %v473 = vpop.f32.mrb[0].mxu0
        %v474 = vpop.f32.mrb[0].mxu0
        %475 = vdwg.mxu0
        %476 = vmatprep.subr.bf16.mxu0 %v386
        %477 = vmatpush1.bf16.msra.mxu0 %v385
        %478 = vmatprep.subr.bf16.mxu0 %v398
        %479 = vmatpush1.bf16.msra.mxu0 %v397
        %480 = vmatprep.subr.bf16.mxu0 0
        %481 = vmatpush1.bf16.msra.mxu0 0
        %482 = vmatprep.subr.bf16.mxu0 0
        %483 = vmatpush1.bf16.msra.mxu0 0
        %484 = vmatprep.subr.bf16.mxu0 0
        %485 = vmatpush1.bf16.msra.mxu0 0
        %486 = vmatprep.subr.bf16.mxu0 0
        %487 = vmatpush1.bf16.msra.mxu0 0
        %488 = vmatprep.subr.bf16.mxu0 0
        %489 = vmatpush1.bf16.msra.mxu0 0
        %490 = vmatprep.subr.bf16.mxu0 0
        %491 = vmatpush1.bf16.msra.mxu0 0
        %492 = vmatprep.subr.bf16.mxu0 0
        %493 = vmatpush1.bf16.msra.mxu0 0
        %494 = vmatprep.subr.bf16.mxu0 0
        %495 = vmatpush1.bf16.msra.mxu0 0
        %496 = vmatprep.subr.bf16.mxu0 0
        %497 = vmatpush1.bf16.msra.mxu0 0
        %498 = vmatprep.subr.bf16.mxu0 0
        %499 = vmatpush1.bf16.msra.mxu0 0
        %500 = vmatprep.subr.bf16.mxu0 0
        %501 = vmatpush1.bf16.msra.mxu0 0
        %502 = vmatprep.subr.bf16.mxu0 0
        %503 = vmatpush1.bf16.msra.mxu0 0
        %504 = vmatprep.subr.bf16.mxu0 0
        %505 = vmatpush1.bf16.msra.mxu0 0
        %506 = vmatprep.subr.bf16.mxu0 0
        %507 = vmatpush1.bf16.msra.mxu0 0
        %508 = vmatprep.mubr.bf16.mxu0 0
        %509 = vmatmul.mubr.bf16.gmra.mrb[0].mxu0 %v433
        %v510 = vpop.f32.mrb[0].mxu0
        %v511 = vadd.f32 %v262, %v510
        %v512 = vpop.f32.mrb[0].mxu0
        %v513 = vadd.f32 %v266, %v512
        %v514 = vpop.f32.mrb[0].mxu0
        %v515 = vpop.f32.mrb[0].mxu0
        %516 = vdwg.mxu0
        %517 = vmatprep.subr.bf16.mxu0 %v388
        %518 = vmatpush1.bf16.msra.mxu0 %v387
        %519 = vmatprep.subr.bf16.mxu0 %v400
        %520 = vmatpush1.bf16.msra.mxu0 %v399
        %521 = vmatprep.subr.bf16.mxu0 0
        %522 = vmatpush1.bf16.msra.mxu0 0
        %523 = vmatprep.subr.bf16.mxu0 0
        %524 = vmatpush1.bf16.msra.mxu0 0
        %525 = vmatprep.subr.bf16.mxu0 0
        %526 = vmatpush1.bf16.msra.mxu0 0
        %527 = vmatprep.subr.bf16.mxu0 0
        %528 = vmatpush1.bf16.msra.mxu0 0
        %529 = vmatprep.subr.bf16.mxu0 0
        %530 = vmatpush1.bf16.msra.mxu0 0
        %531 = vmatprep.subr.bf16.mxu0 0
        %532 = vmatpush1.bf16.msra.mxu0 0
        %533 = vmatprep.subr.bf16.mxu0 0
        %534 = vmatpush1.bf16.msra.mxu0 0
        %535 = vmatprep.subr.bf16.mxu0 0
        %536 = vmatpush1.bf16.msra.mxu0 0
        %537 = vmatprep.subr.bf16.mxu0 0
        %538 = vmatpush1.bf16.msra.mxu0 0
        %539 = vmatprep.subr.bf16.mxu0 0
        %540 = vmatpush1.bf16.msra.mxu0 0
        %541 = vmatprep.subr.bf16.mxu0 0
        %542 = vmatpush1.bf16.msra.mxu0 0
        %543 = vmatprep.subr.bf16.mxu0 0
        %544 = vmatpush1.bf16.msra.mxu0 0
        %545 = vmatprep.subr.bf16.mxu0 0
        %546 = vmatpush1.bf16.msra.mxu0 0
        %547 = vmatprep.subr.bf16.mxu0 0
        %548 = vmatpush1.bf16.msra.mxu0 0
        %549 = vmatprep.mubr.bf16.mxu0 0
        %550 = vmatmul.mubr.bf16.gmra.mrb[0].mxu0 %v433
        %v551 = vpop.f32.mrb[0].mxu0
        %v552 = vadd.f32 %v270, %v551
        %v553 = vpop.f32.mrb[0].mxu0
        %v554 = vadd.f32 %v274, %v553
        %v555 = vpop.f32.mrb[0].mxu0
        %v556 = vpop.f32.mrb[0].mxu0
        %557 = vdwg.mxu0
        %558 = vmatprep.subr.bf16.mxu0 %v390
        %559 = vmatpush1.bf16.msra.mxu0 %v389
        %560 = vmatprep.subr.bf16.mxu0 %v402
        %561 = vmatpush1.bf16.msra.mxu0 %v401
        %562 = vmatprep.subr.bf16.mxu0 0
        %563 = vmatpush1.bf16.msra.mxu0 0
        %564 = vmatprep.subr.bf16.mxu0 0
        %565 = vmatpush1.bf16.msra.mxu0 0
        %566 = vmatprep.subr.bf16.mxu0 0
        %567 = vmatpush1.bf16.msra.mxu0 0
        %568 = vmatprep.subr.bf16.mxu0 0
        %569 = vmatpush1.bf16.msra.mxu0 0
        %570 = vmatprep.subr.bf16.mxu0 0
        %571 = vmatpush1.bf16.msra.mxu0 0
        %572 = vmatprep.subr.bf16.mxu0 0
        %573 = vmatpush1.bf16.msra.mxu0 0
        %574 = vmatprep.subr.bf16.mxu0 0
        %575 = vmatpush1.bf16.msra.mxu0 0
        %576 = vmatprep.subr.bf16.mxu0 0
        %577 = vmatpush1.bf16.msra.mxu0 0
        %578 = vmatprep.subr.bf16.mxu0 0
        %579 = vmatpush1.bf16.msra.mxu0 0
        %580 = vmatprep.subr.bf16.mxu0 0
        %581 = vmatpush1.bf16.msra.mxu0 0
        %582 = vmatprep.subr.bf16.mxu0 0
        %583 = vmatpush1.bf16.msra.mxu0 0
        %584 = vmatprep.subr.bf16.mxu0 0
        %585 = vmatpush1.bf16.msra.mxu0 0
        %586 = vmatprep.subr.bf16.mxu0 0
        %587 = vmatpush1.bf16.msra.mxu0 0
        %588 = vmatprep.subr.bf16.mxu0 0
        %589 = vmatpush1.bf16.msra.mxu0 0
        %590 = vmatprep.mubr.bf16.mxu0 0
        %591 = vmatmul.mubr.bf16.gmra.mrb[0].mxu0 %v433
        %v592 = vpop.f32.mrb[0].mxu0
        %v593 = vadd.f32 %v278, %v592
        %v594 = vpop.f32.mrb[0].mxu0
        %v595 = vadd.f32 %v282, %v594
        %v596 = vpop.f32.mrb[0].mxu0
        %v597 = vpop.f32.mrb[0].mxu0
        %598 = vdwg.mxu0
        %599 = vmatprep.subr.bf16.mxu0 %v392
        %600 = vmatpush1.bf16.msra.mxu0 %v391
        %601 = vmatprep.subr.bf16.mxu0 %v404
        %602 = vmatpush1.bf16.msra.mxu0 %v403
        %603 = vmatprep.subr.bf16.mxu0 0
        %604 = vmatpush1.bf16.msra.mxu0 0
        %605 = vmatprep.subr.bf16.mxu0 0
        %606 = vmatpush1.bf16.msra.mxu0 0
        %607 = vmatprep.subr.bf16.mxu0 0
        %608 = vmatpush1.bf16.msra.mxu0 0
        %609 = vmatprep.subr.bf16.mxu0 0
        %610 = vmatpush1.bf16.msra.mxu0 0
        %611 = vmatprep.subr.bf16.mxu0 0
        %612 = vmatpush1.bf16.msra.mxu0 0
        %613 = vmatprep.subr.bf16.mxu0 0
        %614 = vmatpush1.bf16.msra.mxu0 0
        %615 = vmatprep.subr.bf16.mxu0 0
        %616 = vmatpush1.bf16.msra.mxu0 0
        %617 = vmatprep.subr.bf16.mxu0 0
        %618 = vmatpush1.bf16.msra.mxu0 0
        %619 = vmatprep.subr.bf16.mxu0 0
        %620 = vmatpush1.bf16.msra.mxu0 0
        %621 = vmatprep.subr.bf16.mxu0 0
        %622 = vmatpush1.bf16.msra.mxu0 0
        %623 = vmatprep.subr.bf16.mxu0 0
        %624 = vmatpush1.bf16.msra.mxu0 0
        %625 = vmatprep.subr.bf16.mxu0 0
        %626 = vmatpush1.bf16.msra.mxu0 0
        %627 = vmatprep.subr.bf16.mxu0 0
        %628 = vmatpush1.bf16.msra.mxu0 0
        %629 = vmatprep.subr.bf16.mxu0 0
        %630 = vmatpush1.bf16.msra.mxu0 0
        %631 = vmatprep.mubr.bf16.mxu0 0
        %632 = vmatmul.mubr.bf16.gmra.mrb[0].mxu0 %v433
        %v633 = vpop.f32.mrb[0].mxu0
        %v634 = vadd.f32 %v286, %v633
        %v635 = vpop.f32.mrb[0].mxu0
        %v636 = vadd.f32 %v290, %v635
        %v637 = vpop.f32.mrb[0].mxu0
        %v638 = vpop.f32.mrb[0].mxu0
        %639 = vdwg.mxu0
        %640 = vmatprep.subr.bf16.mxu0 %v394
        %641 = vmatpush1.bf16.msra.mxu0 %v393
        %642 = vmatprep.subr.bf16.mxu0 %v406
        %643 = vmatpush1.bf16.msra.mxu0 %v405
        %644 = vmatprep.subr.bf16.mxu0 0
        %645 = vmatpush1.bf16.msra.mxu0 0
        %646 = vmatprep.subr.bf16.mxu0 0
        %647 = vmatpush1.bf16.msra.mxu0 0
        %648 = vmatprep.subr.bf16.mxu0 0
        %649 = vmatpush1.bf16.msra.mxu0 0
        %650 = vmatprep.subr.bf16.mxu0 0
        %651 = vmatpush1.bf16.msra.mxu0 0
        %652 = vmatprep.subr.bf16.mxu0 0
        %653 = vmatpush1.bf16.msra.mxu0 0
        %654 = vmatprep.subr.bf16.mxu0 0
        %655 = vmatpush1.bf16.msra.mxu0 0
        %656 = vmatprep.subr.bf16.mxu0 0
        %657 = vmatpush1.bf16.msra.mxu0 0
        %658 = vmatprep.subr.bf16.mxu0 0
        %659 = vmatpush1.bf16.msra.mxu0 0
        %660 = vmatprep.subr.bf16.mxu0 0
        %661 = vmatpush1.bf16.msra.mxu0 0
        %662 = vmatprep.subr.bf16.mxu0 0
        %663 = vmatpush1.bf16.msra.mxu0 0
        %664 = vmatprep.subr.bf16.mxu0 0
        %665 = vmatpush1.bf16.msra.mxu0 0
        %666 = vmatprep.subr.bf16.mxu0 0
        %667 = vmatpush1.bf16.msra.mxu0 0
        %668 = vmatprep.subr.bf16.mxu0 0
        %669 = vmatpush1.bf16.msra.mxu0 0
        %670 = vmatprep.subr.bf16.mxu0 0
        %671 = vmatpush1.bf16.msra.mxu0 0
        %672 = vmatprep.mubr.bf16.mxu0 0
        %673 = vmatmul.mubr.bf16.gmra.mrb[0].mxu0 %v433
        %v674 = vpop.f32.mrb[0].mxu0
        %v675 = vadd.f32 %v294, %v674
        %v676 = vpop.f32.mrb[0].mxu0
        %v677 = vadd.f32 %v298, %v676
        %v678 = vpop.f32.mrb[0].mxu0
        %v679 = vpop.f32.mrb[0].mxu0
        %680 = vdwg.mxu0
        %v681 = vmul.f32 %v470, 0.17677669
        %v682 = vpack.c.bf16 %v681, %v681
        %v683 = vpack.c.bf16 %v472, %v472
        %v684 = vpack.c.bf16 %v511, %v511
        %685 = vmatprep.subr.bf16.mxu0 0
        %686 = vmatpush1.bf16.xpose.msra.mxu0 %v683
        %687 = vmatprep.subr.bf16.mxu0 0
        %688 = vmatpush1.bf16.xpose.msra.mxu0 0
        %689 = vmatprep.subr.bf16.mxu0 0
        %690 = vmatpush1.bf16.xpose.msra.mxu0 0
        %691 = vmatprep.subr.bf16.mxu0 0
        %692 = vmatpush1.bf16.xpose.msra.mxu0 0
        %693 = vmatprep.subr.bf16.mxu0 0
        %694 = vmatpush1.bf16.xpose.msra.mxu0 0
        %695 = vmatprep.subr.bf16.mxu0 0
        %696 = vmatpush1.bf16.xpose.msra.mxu0 0
        %697 = vmatprep.subr.bf16.mxu0 0
        %698 = vmatpush1.bf16.xpose.msra.mxu0 0
        %699 = vmatprep.subr.bf16.mxu0 0
        %700 = vmatpush1.bf16.xpose.msra.mxu0 0
        %701 = vmatprep.subr.bf16.mxu0 0
        %702 = vmatpush1.bf16.xpose.msra.mxu0 0
        %703 = vmatprep.subr.bf16.mxu0 0
        %704 = vmatpush1.bf16.xpose.msra.mxu0 0
        %705 = vmatprep.subr.bf16.mxu0 0
        %706 = vmatpush1.bf16.xpose.msra.mxu0 0
        %707 = vmatprep.subr.bf16.mxu0 0
        %708 = vmatpush1.bf16.xpose.msra.mxu0 0
        %709 = vmatprep.subr.bf16.mxu0 0
        %710 = vmatpush1.bf16.xpose.msra.mxu0 0
        %711 = vmatprep.subr.bf16.mxu0 0
        %712 = vmatpush1.bf16.xpose.msra.mxu0 0
        %713 = vmatprep.subr.bf16.mxu0 0
        %714 = vmatpush1.bf16.xpose.msra.mxu0 0
        %715 = vmatprep.subr.bf16.mxu0 0
        %716 = vmatpush1.bf16.xpose.msra.mxu0 0
        %717 = vmatprep.mubr.bf16.mxu0 0
        %718 = vmatmul.mubr.bf16.gmra.mrb[0].mxu0 %v682
        %v719 = vpop.f32.mrb[0].mxu0
        %v720 = vadd.f32 0.0, %v719
        %v721 = vpop.f32.mrb[0].mxu0
        %v722 = vpop.f32.mrb[0].mxu0
        %v723 = vpop.f32.mrb[0].mxu0
        %724 = vdwg.mxu0
        %vm725 = vcmask 64512
        %v726 = vsel %vm725, %v720, -inf
        %727 = vmax.xlane.f32.xlu0 %v726
        %v728 = vpop.xlane.xlu0 %727
        %v729 = vsub.f32 %v720, %v728
        %v730 = vmul.f32 %v729, 1.442695
        %v731 = vpow.pop %v730
        %v732 = vsel %vm725, %v731, 0.0
        %733 = vadd.xlane.f32.xlu0 %v732
        %v734 = vpop.xlane.xlu0 %733
        %v735 = vrcp.pop %v734
        %v736 = vmul.f32 %v731, %v735
        %v737 = vpack.c.bf16 %v736, %v736
        %v739 = vsel %vm725, %v737, 0
        %vm741 = vcmask 1043456
        %v743 = vsel %vm741, %v684, 0
        %745 = vmatprep.subr.bf16.mxu0 0
        %746 = vmatpush1.bf16.msra.mxu0 %v743
        %747 = vmatprep.subr.bf16.mxu0 0
        %748 = vmatpush1.bf16.msra.mxu0 0
        %749 = vmatprep.subr.bf16.mxu0 0
        %750 = vmatpush1.bf16.msra.mxu0 0
        %751 = vmatprep.subr.bf16.mxu0 0
        %752 = vmatpush1.bf16.msra.mxu0 0
        %753 = vmatprep.subr.bf16.mxu0 0
        %754 = vmatpush1.bf16.msra.mxu0 0
        %755 = vmatprep.subr.bf16.mxu0 0
        %756 = vmatpush1.bf16.msra.mxu0 0
        %757 = vmatprep.subr.bf16.mxu0 0
        %758 = vmatpush1.bf16.msra.mxu0 0
        %759 = vmatprep.subr.bf16.mxu0 0
        %760 = vmatpush1.bf16.msra.mxu0 0
        %761 = vmatprep.subr.bf16.mxu0 0
        %762 = vmatpush1.bf16.msra.mxu0 0
        %763 = vmatprep.subr.bf16.mxu0 0
        %764 = vmatpush1.bf16.msra.mxu0 0
        %765 = vmatprep.subr.bf16.mxu0 0
        %766 = vmatpush1.bf16.msra.mxu0 0
        %767 = vmatprep.subr.bf16.mxu0 0
        %768 = vmatpush1.bf16.msra.mxu0 0
        %769 = vmatprep.subr.bf16.mxu0 0
        %770 = vmatpush1.bf16.msra.mxu0 0
        %771 = vmatprep.subr.bf16.mxu0 0
        %772 = vmatpush1.bf16.msra.mxu0 0
        %773 = vmatprep.subr.bf16.mxu0 0
        %774 = vmatpush1.bf16.msra.mxu0 0
        %775 = vmatprep.subr.bf16.mxu0 0
        %776 = vmatpush1.bf16.msra.mxu0 0
        %777 = vmatprep.mubr.bf16.mxu0 0
        %778 = vmatmul.mubr.bf16.gmra.mrb[0].mxu0 %v739
        %v779 = vpop.f32.mrb[0].mxu0
        %v780 = vadd.f32 0.0, %v779
        %v781 = vpop.f32.mrb[0].mxu0
        %v782 = vpop.f32.mrb[0].mxu0
        %v783 = vpop.f32.mrb[0].mxu0
        %784 = vdwg.mxu0
        %v785 = vpack.c.bf16 %v780, %v780
        %v786 = vld [vmem:[%s3] sm:$0xf]
        %v787 = vld [vmem:[%s3 + $0x4] sm:$0xf]
        %v788 = vld [vmem:[%s3 + $0x8] sm:$0xf]
        %v789 = vld [vmem:[%s3 + $0xc] sm:$0xf]
        %v790 = vld [vmem:[%s3 + $0x10] sm:$0xf]
        %v791 = vld [vmem:[%s3 + $0x14] sm:$0xf]
        %v792 = vld [vmem:[%s3 + $0x18] sm:$0xf]
        %v793 = vld [vmem:[%s3 + $0x1c] sm:$0xf]
        %v794 = vld [vmem:[%s3 + $0x20] sm:$0xf]
        %v795 = vld [vmem:[%s3 + $0x24] sm:$0xf]
        %v796 = vld [vmem:[%s3 + $0x28] sm:$0xf]
        %v797 = vld [vmem:[%s3 + $0x2c] sm:$0xf]
        %v798 = vld [vmem:[%s3 + $0x30] sm:$0xf]
        %v799 = vld [vmem:[%s3 + $0x34] sm:$0xf]
        %v800 = vld [vmem:[%s3 + $0x38] sm:$0xf]
        %v801 = vld [vmem:[%s3 + $0x3c] sm:$0xf]
        %v802 = vmul.f32 %v513, 0.17677669
        %v803 = vpack.c.bf16 %v802, %v802
        %v804 = vpack.c.bf16 %v552, %v552
        %v805 = vpack.c.bf16 %v554, %v554
        %806 = vmatprep.subr.bf16.mxu0 0
        %807 = vmatpush1.bf16.xpose.msra.mxu0 %v804
        %808 = vmatprep.subr.bf16.mxu0 0
        %809 = vmatpush1.bf16.xpose.msra.mxu0 0
        %810 = vmatprep.subr.bf16.mxu0 0
        %811 = vmatpush1.bf16.xpose.msra.mxu0 0
        %812 = vmatprep.subr.bf16.mxu0 0
        %813 = vmatpush1.bf16.xpose.msra.mxu0 0
        %814 = vmatprep.subr.bf16.mxu0 0
        %815 = vmatpush1.bf16.xpose.msra.mxu0 0
        %816 = vmatprep.subr.bf16.mxu0 0
        %817 = vmatpush1.bf16.xpose.msra.mxu0 0
        %818 = vmatprep.subr.bf16.mxu0 0
        %819 = vmatpush1.bf16.xpose.msra.mxu0 0
        %820 = vmatprep.subr.bf16.mxu0 0
        %821 = vmatpush1.bf16.xpose.msra.mxu0 0
        %822 = vmatprep.subr.bf16.mxu0 0
        %823 = vmatpush1.bf16.xpose.msra.mxu0 0
        %824 = vmatprep.subr.bf16.mxu0 0
        %825 = vmatpush1.bf16.xpose.msra.mxu0 0
        %826 = vmatprep.subr.bf16.mxu0 0
        %827 = vmatpush1.bf16.xpose.msra.mxu0 0
        %828 = vmatprep.subr.bf16.mxu0 0
        %829 = vmatpush1.bf16.xpose.msra.mxu0 0
        %830 = vmatprep.subr.bf16.mxu0 0
        %831 = vmatpush1.bf16.xpose.msra.mxu0 0
        %832 = vmatprep.subr.bf16.mxu0 0
        %833 = vmatpush1.bf16.xpose.msra.mxu0 0
        %834 = vmatprep.subr.bf16.mxu0 0
        %835 = vmatpush1.bf16.xpose.msra.mxu0 0
        %836 = vmatprep.subr.bf16.mxu0 0
        %837 = vmatpush1.bf16.xpose.msra.mxu0 0
        %838 = vmatprep.mubr.bf16.mxu0 0
        %839 = vmatmul.mubr.bf16.gmra.mrb[0].mxu0 %v803
        %v840 = vpop.f32.mrb[0].mxu0
        %v841 = vadd.f32 0.0, %v840
        %v842 = vpop.f32.mrb[0].mxu0
        %v843 = vpop.f32.mrb[0].mxu0
        %v844 = vpop.f32.mrb[0].mxu0
        %845 = vdwg.mxu0
        %v846 = vsel %vm725, %v841, -inf
        %847 = vmax.xlane.f32.xlu0 %v846
        %v848 = vpop.xlane.xlu0 %847
        %v849 = vsub.f32 %v841, %v848
        %v850 = vmul.f32 %v849, 1.442695
        %v851 = vpow.pop %v850
        %v852 = vsel %vm725, %v851, 0.0
        %853 = vadd.xlane.f32.xlu0 %v852
        %v854 = vpop.xlane.xlu0 %853
        %v855 = vrcp.pop %v854
        %v856 = vmul.f32 %v851, %v855
        %v857 = vpack.c.bf16 %v856, %v856
        %v859 = vsel %vm725, %v857, 0
        %v862 = vsel %vm741, %v805, 0
        %864 = vmatprep.subr.bf16.mxu0 0
        %865 = vmatpush1.bf16.msra.mxu0 %v862
        %866 = vmatprep.subr.bf16.mxu0 0
        %867 = vmatpush1.bf16.msra.mxu0 0
        %868 = vmatprep.subr.bf16.mxu0 0
        %869 = vmatpush1.bf16.msra.mxu0 0
        %870 = vmatprep.subr.bf16.mxu0 0
        %871 = vmatpush1.bf16.msra.mxu0 0
        %872 = vmatprep.subr.bf16.mxu0 0
        %873 = vmatpush1.bf16.msra.mxu0 0
        %874 = vmatprep.subr.bf16.mxu0 0
        %875 = vmatpush1.bf16.msra.mxu0 0
        %876 = vmatprep.subr.bf16.mxu0 0
        %877 = vmatpush1.bf16.msra.mxu0 0
        %878 = vmatprep.subr.bf16.mxu0 0
        %879 = vmatpush1.bf16.msra.mxu0 0
        %880 = vmatprep.subr.bf16.mxu0 0
        %881 = vmatpush1.bf16.msra.mxu0 0
        %882 = vmatprep.subr.bf16.mxu0 0
        %883 = vmatpush1.bf16.msra.mxu0 0
        %884 = vmatprep.subr.bf16.mxu0 0
        %885 = vmatpush1.bf16.msra.mxu0 0
        %886 = vmatprep.subr.bf16.mxu0 0
        %887 = vmatpush1.bf16.msra.mxu0 0
        %888 = vmatprep.subr.bf16.mxu0 0
        %889 = vmatpush1.bf16.msra.mxu0 0
        %890 = vmatprep.subr.bf16.mxu0 0
        %891 = vmatpush1.bf16.msra.mxu0 0
        %892 = vmatprep.subr.bf16.mxu0 0
        %893 = vmatpush1.bf16.msra.mxu0 0
        %894 = vmatprep.subr.bf16.mxu0 0
        %895 = vmatpush1.bf16.msra.mxu0 0
        %896 = vmatprep.mubr.bf16.mxu0 0
        %897 = vmatmul.mubr.bf16.gmra.mrb[0].mxu0 %v859
        %v898 = vpop.f32.mrb[0].mxu0
        %v899 = vadd.f32 0.0, %v898
        %v900 = vpop.f32.mrb[0].mxu0
        %v901 = vpop.f32.mrb[0].mxu0
        %v902 = vpop.f32.mrb[0].mxu0
        %903 = vdwg.mxu0
        %v904 = vpack.c.bf16 %v899, %v899
        %s905 = scalar_lea.vmem %s3, 64
        %v906 = vld [vmem:[%s905] sm:$0xf]
        %v907 = vld [vmem:[%s905 + $0x4] sm:$0xf]
        %v908 = vld [vmem:[%s905 + $0x8] sm:$0xf]
        %v909 = vld [vmem:[%s905 + $0xc] sm:$0xf]
        %v910 = vld [vmem:[%s905 + $0x10] sm:$0xf]
        %v911 = vld [vmem:[%s905 + $0x14] sm:$0xf]
        %v912 = vld [vmem:[%s905 + $0x18] sm:$0xf]
        %v913 = vld [vmem:[%s905 + $0x1c] sm:$0xf]
        %v914 = vld [vmem:[%s905 + $0x20] sm:$0xf]
        %v915 = vld [vmem:[%s905 + $0x24] sm:$0xf]
        %v916 = vld [vmem:[%s905 + $0x28] sm:$0xf]
        %v917 = vld [vmem:[%s905 + $0x2c] sm:$0xf]
        %v918 = vld [vmem:[%s905 + $0x30] sm:$0xf]
        %v919 = vld [vmem:[%s905 + $0x34] sm:$0xf]
        %v920 = vld [vmem:[%s905 + $0x38] sm:$0xf]
        %v921 = vld [vmem:[%s905 + $0x3c] sm:$0xf]
        %v938 = vunpack.c.l.b16 %v906
        %v939 = vunpack.c.l.b16 %v907
        %v940 = vunpack.c.l.b16 %v908
        %v941 = vunpack.c.l.b16 %v909
        %v942 = vunpack.c.l.b16 %v910
        %v943 = vunpack.c.l.b16 %v911
        %v944 = vunpack.c.l.b16 %v912
        %v945 = vunpack.c.l.b16 %v913
        %v946 = vunpack.c.l.b16 %v914
        %v947 = vunpack.c.l.b16 %v915
        %v948 = vunpack.c.l.b16 %v916
        %v949 = vunpack.c.l.b16 %v917
        %v950 = vunpack.c.l.b16 %v918
        %v951 = vunpack.c.l.b16 %v919
        %v952 = vunpack.c.l.b16 %v920
        %v953 = vunpack.c.l.b16 %v921
        %v954 = vpack.c.b16 %v939, %v938
        %v955 = vpack.c.b16 %v941, %v940
        %v956 = vpack.c.b16 %v943, %v942
        %v957 = vpack.c.b16 %v945, %v944
        %v958 = vpack.c.b16 %v947, %v946
        %v959 = vpack.c.b16 %v949, %v948
        %v960 = vpack.c.b16 %v951, %v950
        %v961 = vpack.c.b16 %v953, %v952
        %970 = vmatprep.subr.bf16.mxu0 0
        %971 = vmatpush1.bf16.msra.mxu0 %v954
        %972 = vmatprep.subr.bf16.mxu0 0
        %973 = vmatpush1.bf16.msra.mxu0 %v955
        %974 = vmatprep.subr.bf16.mxu0 0
        %975 = vmatpush1.bf16.msra.mxu0 %v956
        %976 = vmatprep.subr.bf16.mxu0 0
        %977 = vmatpush1.bf16.msra.mxu0 %v957
        %978 = vmatprep.subr.bf16.mxu0 0
        %979 = vmatpush1.bf16.msra.mxu0 %v958
        %980 = vmatprep.subr.bf16.mxu0 0
        %981 = vmatpush1.bf16.msra.mxu0 %v959
        %982 = vmatprep.subr.bf16.mxu0 0
        %983 = vmatpush1.bf16.msra.mxu0 %v960
        %984 = vmatprep.subr.bf16.mxu0 0
        %985 = vmatpush1.bf16.msra.mxu0 %v961
        %986 = vmatprep.subr.bf16.mxu0 0
        %987 = vmatpush1.bf16.msra.mxu0 0
        %988 = vmatprep.subr.bf16.mxu0 0
        %989 = vmatpush1.bf16.msra.mxu0 0
        %990 = vmatprep.subr.bf16.mxu0 0
        %991 = vmatpush1.bf16.msra.mxu0 0
        %992 = vmatprep.subr.bf16.mxu0 0
        %993 = vmatpush1.bf16.msra.mxu0 0
        %994 = vmatprep.subr.bf16.mxu0 0
        %995 = vmatpush1.bf16.msra.mxu0 0
        %996 = vmatprep.subr.bf16.mxu0 0
        %997 = vmatpush1.bf16.msra.mxu0 0
        %998 = vmatprep.subr.bf16.mxu0 0
        %999 = vmatpush1.bf16.msra.mxu0 0
        %1000 = vmatprep.subr.bf16.mxu0 0
        %1001 = vmatpush1.bf16.msra.mxu0 0
        %1002 = vmatprep.mubr.bf16.mxu0 0
        %1003 = vmatmul.mubr.bf16.gmra.mrb[0].mxu0 %v904
        %v1004 = vpop.f32.mrb[0].mxu0
        %v1005 = vadd.f32 0.0, %v1004
        %v1006 = vpop.f32.mrb[0].mxu0
        %v1007 = vpop.f32.mrb[0].mxu0
        %v1008 = vpop.f32.mrb[0].mxu0
        %1009 = vdwg.mxu0
        %v1026 = vunpack.c.l.b16 %v786
        %v1027 = vunpack.c.l.b16 %v787
        %v1028 = vunpack.c.l.b16 %v788
        %v1029 = vunpack.c.l.b16 %v789
        %v1030 = vunpack.c.l.b16 %v790
        %v1031 = vunpack.c.l.b16 %v791
        %v1032 = vunpack.c.l.b16 %v792
        %v1033 = vunpack.c.l.b16 %v793
        %v1034 = vunpack.c.l.b16 %v794
        %v1035 = vunpack.c.l.b16 %v795
        %v1036 = vunpack.c.l.b16 %v796
        %v1037 = vunpack.c.l.b16 %v797
        %v1038 = vunpack.c.l.b16 %v798
        %v1039 = vunpack.c.l.b16 %v799
        %v1040 = vunpack.c.l.b16 %v800
        %v1041 = vunpack.c.l.b16 %v801
        %v1042 = vpack.c.b16 %v1027, %v1026
        %v1043 = vpack.c.b16 %v1029, %v1028
        %v1044 = vpack.c.b16 %v1031, %v1030
        %v1045 = vpack.c.b16 %v1033, %v1032
        %v1046 = vpack.c.b16 %v1035, %v1034
        %v1047 = vpack.c.b16 %v1037, %v1036
        %v1048 = vpack.c.b16 %v1039, %v1038
        %v1049 = vpack.c.b16 %v1041, %v1040
        %1058 = vmatprep.subr.bf16.mxu0 0
        %1059 = vmatpush1.bf16.msra.mxu0 %v1042
        %1060 = vmatprep.subr.bf16.mxu0 0
        %1061 = vmatpush1.bf16.msra.mxu0 %v1043
        %1062 = vmatprep.subr.bf16.mxu0 0
        %1063 = vmatpush1.bf16.msra.mxu0 %v1044
        %1064 = vmatprep.subr.bf16.mxu0 0
        %1065 = vmatpush1.bf16.msra.mxu0 %v1045
        %1066 = vmatprep.subr.bf16.mxu0 0
        %1067 = vmatpush1.bf16.msra.mxu0 %v1046
        %1068 = vmatprep.subr.bf16.mxu0 0
        %1069 = vmatpush1.bf16.msra.mxu0 %v1047
        %1070 = vmatprep.subr.bf16.mxu0 0
        %1071 = vmatpush1.bf16.msra.mxu0 %v1048
        %1072 = vmatprep.subr.bf16.mxu0 0
        %1073 = vmatpush1.bf16.msra.mxu0 %v1049
        %1074 = vmatprep.subr.bf16.mxu0 0
        %1075 = vmatpush1.bf16.msra.mxu0 0
        %1076 = vmatprep.subr.bf16.mxu0 0
        %1077 = vmatpush1.bf16.msra.mxu0 0
        %1078 = vmatprep.subr.bf16.mxu0 0
        %1079 = vmatpush1.bf16.msra.mxu0 0
        %1080 = vmatprep.subr.bf16.mxu0 0
        %1081 = vmatpush1.bf16.msra.mxu0 0
        %1082 = vmatprep.subr.bf16.mxu0 0
        %1083 = vmatpush1.bf16.msra.mxu0 0
        %1084 = vmatprep.subr.bf16.mxu0 0
        %1085 = vmatpush1.bf16.msra.mxu0 0
        %1086 = vmatprep.subr.bf16.mxu0 0
        %1087 = vmatpush1.bf16.msra.mxu0 0
        %1088 = vmatprep.subr.bf16.mxu0 0
        %1089 = vmatpush1.bf16.msra.mxu0 0
        %1090 = vmatprep.mubr.bf16.mxu0 0
        %1091 = vmatmul.mubr.bf16.gmra.mrb[0].mxu0 %v785
        %v1092 = vpop.f32.mrb[0].mxu0
        %v1093 = vadd.f32 %v1005, %v1092
        %v1094 = vpop.f32.mrb[0].mxu0
        %v1095 = vpop.f32.mrb[0].mxu0
        %v1096 = vpop.f32.mrb[0].mxu0
        %1097 = vdwg.mxu0
        %v1098 = vmul.f32 %v593, 0.17677669
        %v1099 = vpack.c.bf16 %v1098, %v1098
        %v1100 = vpack.c.bf16 %v595, %v595
        %v1101 = vpack.c.bf16 %v634, %v634
        %1102 = vmatprep.subr.bf16.mxu0 0
        %1103 = vmatpush1.bf16.xpose.msra.mxu0 %v1100
        %1104 = vmatprep.subr.bf16.mxu0 0
        %1105 = vmatpush1.bf16.xpose.msra.mxu0 0
        %1106 = vmatprep.subr.bf16.mxu0 0
        %1107 = vmatpush1.bf16.xpose.msra.mxu0 0
        %1108 = vmatprep.subr.bf16.mxu0 0
        %1109 = vmatpush1.bf16.xpose.msra.mxu0 0
        %1110 = vmatprep.subr.bf16.mxu0 0
        %1111 = vmatpush1.bf16.xpose.msra.mxu0 0
        %1112 = vmatprep.subr.bf16.mxu0 0
        %1113 = vmatpush1.bf16.xpose.msra.mxu0 0
        %1114 = vmatprep.subr.bf16.mxu0 0
        %1115 = vmatpush1.bf16.xpose.msra.mxu0 0
        %1116 = vmatprep.subr.bf16.mxu0 0
        %1117 = vmatpush1.bf16.xpose.msra.mxu0 0
        %1118 = vmatprep.subr.bf16.mxu0 0
        %1119 = vmatpush1.bf16.xpose.msra.mxu0 0
        %1120 = vmatprep.subr.bf16.mxu0 0
        %1121 = vmatpush1.bf16.xpose.msra.mxu0 0
        %1122 = vmatprep.subr.bf16.mxu0 0
        %1123 = vmatpush1.bf16.xpose.msra.mxu0 0
        %1124 = vmatprep.subr.bf16.mxu0 0
        %1125 = vmatpush1.bf16.xpose.msra.mxu0 0
        %1126 = vmatprep.subr.bf16.mxu0 0
        %1127 = vmatpush1.bf16.xpose.msra.mxu0 0
        %1128 = vmatprep.subr.bf16.mxu0 0
        %1129 = vmatpush1.bf16.xpose.msra.mxu0 0
        %1130 = vmatprep.subr.bf16.mxu0 0
        %1131 = vmatpush1.bf16.xpose.msra.mxu0 0
        %1132 = vmatprep.subr.bf16.mxu0 0
        %1133 = vmatpush1.bf16.xpose.msra.mxu0 0
        %1134 = vmatprep.mubr.bf16.mxu0 0
        %1135 = vmatmul.mubr.bf16.gmra.mrb[0].mxu0 %v1099
        %v1136 = vpop.f32.mrb[0].mxu0
        %v1137 = vadd.f32 0.0, %v1136
        %v1138 = vpop.f32.mrb[0].mxu0
        %v1139 = vpop.f32.mrb[0].mxu0
        %v1140 = vpop.f32.mrb[0].mxu0
        %1141 = vdwg.mxu0
        %v1142 = vsel %vm725, %v1137, -inf
        %1143 = vmax.xlane.f32.xlu0 %v1142
        %v1144 = vpop.xlane.xlu0 %1143
        %v1145 = vsub.f32 %v1137, %v1144
        %v1146 = vmul.f32 %v1145, 1.442695
        %v1147 = vpow.pop %v1146
        %v1148 = vsel %vm725, %v1147, 0.0
        %1149 = vadd.xlane.f32.xlu0 %v1148
        %v1150 = vpop.xlane.xlu0 %1149
        %v1151 = vrcp.pop %v1150
        %v1152 = vmul.f32 %v1147, %v1151
        %v1153 = vpack.c.bf16 %v1152, %v1152
        %v1155 = vsel %vm725, %v1153, 0
        %v1158 = vsel %vm741, %v1101, 0
        %1160 = vmatprep.subr.bf16.mxu0 0
        %1161 = vmatpush1.bf16.msra.mxu0 %v1158
        %1162 = vmatprep.subr.bf16.mxu0 0
        %1163 = vmatpush1.bf16.msra.mxu0 0
        %1164 = vmatprep.subr.bf16.mxu0 0
        %1165 = vmatpush1.bf16.msra.mxu0 0
        %1166 = vmatprep.subr.bf16.mxu0 0
        %1167 = vmatpush1.bf16.msra.mxu0 0
        %1168 = vmatprep.subr.bf16.mxu0 0
        %1169 = vmatpush1.bf16.msra.mxu0 0
        %1170 = vmatprep.subr.bf16.mxu0 0
        %1171 = vmatpush1.bf16.msra.mxu0 0
        %1172 = vmatprep.subr.bf16.mxu0 0
        %1173 = vmatpush1.bf16.msra.mxu0 0
        %1174 = vmatprep.subr.bf16.mxu0 0
        %1175 = vmatpush1.bf16.msra.mxu0 0
        %1176 = vmatprep.subr.bf16.mxu0 0
        %1177 = vmatpush1.bf16.msra.mxu0 0
        %1178 = vmatprep.subr.bf16.mxu0 0
        %1179 = vmatpush1.bf16.msra.mxu0 0
        %1180 = vmatprep.subr.bf16.mxu0 0
        %1181 = vmatpush1.bf16.msra.mxu0 0
        %1182 = vmatprep.subr.bf16.mxu0 0
        %1183 = vmatpush1.bf16.msra.mxu0 0
        %1184 = vmatprep.subr.bf16.mxu0 0
        %1185 = vmatpush1.bf16.msra.mxu0 0
        %1186 = vmatprep.subr.bf16.mxu0 0
        %1187 = vmatpush1.bf16.msra.mxu0 0
        %1188 = vmatprep.subr.bf16.mxu0 0
        %1189 = vmatpush1.bf16.msra.mxu0 0
        %1190 = vmatprep.subr.bf16.mxu0 0
        %1191 = vmatpush1.bf16.msra.mxu0 0
        %1192 = vmatprep.mubr.bf16.mxu0 0
        %1193 = vmatmul.mubr.bf16.gmra.mrb[0].mxu0 %v1155
        %v1194 = vpop.f32.mrb[0].mxu0
        %v1195 = vadd.f32 0.0, %v1194
        %v1196 = vpop.f32.mrb[0].mxu0
        %v1197 = vpop.f32.mrb[0].mxu0
        %v1198 = vpop.f32.mrb[0].mxu0
        %1199 = vdwg.mxu0
        %v1200 = vpack.c.bf16 %v1195, %v1195
        %s1201 = scalar_lea.vmem %s3, 128
        %v1202 = vld [vmem:[%s1201] sm:$0xf]
        %v1203 = vld [vmem:[%s1201 + $0x4] sm:$0xf]
        %v1204 = vld [vmem:[%s1201 + $0x8] sm:$0xf]
        %v1205 = vld [vmem:[%s1201 + $0xc] sm:$0xf]
        %v1206 = vld [vmem:[%s1201 + $0x10] sm:$0xf]
        %v1207 = vld [vmem:[%s1201 + $0x14] sm:$0xf]
        %v1208 = vld [vmem:[%s1201 + $0x18] sm:$0xf]
        %v1209 = vld [vmem:[%s1201 + $0x1c] sm:$0xf]
        %v1210 = vld [vmem:[%s1201 + $0x20] sm:$0xf]
        %v1211 = vld [vmem:[%s1201 + $0x24] sm:$0xf]
        %v1212 = vld [vmem:[%s1201 + $0x28] sm:$0xf]
        %v1213 = vld [vmem:[%s1201 + $0x2c] sm:$0xf]
        %v1214 = vld [vmem:[%s1201 + $0x30] sm:$0xf]
        %v1215 = vld [vmem:[%s1201 + $0x34] sm:$0xf]
        %v1216 = vld [vmem:[%s1201 + $0x38] sm:$0xf]
        %v1217 = vld [vmem:[%s1201 + $0x3c] sm:$0xf]
        %v1234 = vunpack.c.l.b16 %v1202
        %v1235 = vunpack.c.l.b16 %v1203
        %v1236 = vunpack.c.l.b16 %v1204
        %v1237 = vunpack.c.l.b16 %v1205
        %v1238 = vunpack.c.l.b16 %v1206
        %v1239 = vunpack.c.l.b16 %v1207
        %v1240 = vunpack.c.l.b16 %v1208
        %v1241 = vunpack.c.l.b16 %v1209
        %v1242 = vunpack.c.l.b16 %v1210
        %v1243 = vunpack.c.l.b16 %v1211
        %v1244 = vunpack.c.l.b16 %v1212
        %v1245 = vunpack.c.l.b16 %v1213
        %v1246 = vunpack.c.l.b16 %v1214
        %v1247 = vunpack.c.l.b16 %v1215
        %v1248 = vunpack.c.l.b16 %v1216
        %v1249 = vunpack.c.l.b16 %v1217
        %v1250 = vpack.c.b16 %v1235, %v1234
        %v1251 = vpack.c.b16 %v1237, %v1236
        %v1252 = vpack.c.b16 %v1239, %v1238
        %v1253 = vpack.c.b16 %v1241, %v1240
        %v1254 = vpack.c.b16 %v1243, %v1242
        %v1255 = vpack.c.b16 %v1245, %v1244
        %v1256 = vpack.c.b16 %v1247, %v1246
        %v1257 = vpack.c.b16 %v1249, %v1248
        %1266 = vmatprep.subr.bf16.mxu0 0
        %1267 = vmatpush1.bf16.msra.mxu0 %v1250
        %1268 = vmatprep.subr.bf16.mxu0 0
        %1269 = vmatpush1.bf16.msra.mxu0 %v1251
        %1270 = vmatprep.subr.bf16.mxu0 0
        %1271 = vmatpush1.bf16.msra.mxu0 %v1252
        %1272 = vmatprep.subr.bf16.mxu0 0
        %1273 = vmatpush1.bf16.msra.mxu0 %v1253
        %1274 = vmatprep.subr.bf16.mxu0 0
        %1275 = vmatpush1.bf16.msra.mxu0 %v1254
        %1276 = vmatprep.subr.bf16.mxu0 0
        %1277 = vmatpush1.bf16.msra.mxu0 %v1255
        %1278 = vmatprep.subr.bf16.mxu0 0
        %1279 = vmatpush1.bf16.msra.mxu0 %v1256
        %1280 = vmatprep.subr.bf16.mxu0 0
        %1281 = vmatpush1.bf16.msra.mxu0 %v1257
        %1282 = vmatprep.subr.bf16.mxu0 0
        %1283 = vmatpush1.bf16.msra.mxu0 0
        %1284 = vmatprep.subr.bf16.mxu0 0
        %1285 = vmatpush1.bf16.msra.mxu0 0
        %1286 = vmatprep.subr.bf16.mxu0 0
        %1287 = vmatpush1.bf16.msra.mxu0 0
        %1288 = vmatprep.subr.bf16.mxu0 0
        %1289 = vmatpush1.bf16.msra.mxu0 0
        %1290 = vmatprep.subr.bf16.mxu0 0
        %1291 = vmatpush1.bf16.msra.mxu0 0
        %1292 = vmatprep.subr.bf16.mxu0 0
        %1293 = vmatpush1.bf16.msra.mxu0 0
        %1294 = vmatprep.subr.bf16.mxu0 0
        %1295 = vmatpush1.bf16.msra.mxu0 0
        %1296 = vmatprep.subr.bf16.mxu0 0
        %1297 = vmatpush1.bf16.msra.mxu0 0
        %1298 = vmatprep.mubr.bf16.mxu0 0
        %1299 = vmatmul.mubr.bf16.gmra.mrb[0].mxu0 %v1200
        %v1300 = vpop.f32.mrb[0].mxu0
        %v1301 = vadd.f32 0.0, %v1300
        %v1302 = vpop.f32.mrb[0].mxu0
        %v1303 = vpop.f32.mrb[0].mxu0
        %v1304 = vpop.f32.mrb[0].mxu0
        %1305 = vdwg.mxu0
        %v1306 = vadd.f32 %v1093, %v1301
        %v1307 = vmul.f32 %v636, 0.17677669
        %v1308 = vpack.c.bf16 %v1307, %v1307
        %v1309 = vpack.c.bf16 %v675, %v675
        %v1310 = vpack.c.bf16 %v677, %v677
        %1311 = vmatprep.subr.bf16.mxu0 0
        %1312 = vmatpush1.bf16.xpose.msra.mxu0 %v1309
        %1313 = vmatprep.subr.bf16.mxu0 0
        %1314 = vmatpush1.bf16.xpose.msra.mxu0 0
        %1315 = vmatprep.subr.bf16.mxu0 0
        %1316 = vmatpush1.bf16.xpose.msra.mxu0 0
        %1317 = vmatprep.subr.bf16.mxu0 0
        %1318 = vmatpush1.bf16.xpose.msra.mxu0 0
        %1319 = vmatprep.subr.bf16.mxu0 0
        %1320 = vmatpush1.bf16.xpose.msra.mxu0 0
        %1321 = vmatprep.subr.bf16.mxu0 0
        %1322 = vmatpush1.bf16.xpose.msra.mxu0 0
        %1323 = vmatprep.subr.bf16.mxu0 0
        %1324 = vmatpush1.bf16.xpose.msra.mxu0 0
        %1325 = vmatprep.subr.bf16.mxu0 0
        %1326 = vmatpush1.bf16.xpose.msra.mxu0 0
        %1327 = vmatprep.subr.bf16.mxu0 0
        %1328 = vmatpush1.bf16.xpose.msra.mxu0 0
        %1329 = vmatprep.subr.bf16.mxu0 0
        %1330 = vmatpush1.bf16.xpose.msra.mxu0 0
        %1331 = vmatprep.subr.bf16.mxu0 0
        %1332 = vmatpush1.bf16.xpose.msra.mxu0 0
        %1333 = vmatprep.subr.bf16.mxu0 0
        %1334 = vmatpush1.bf16.xpose.msra.mxu0 0
        %1335 = vmatprep.subr.bf16.mxu0 0
        %1336 = vmatpush1.bf16.xpose.msra.mxu0 0
        %1337 = vmatprep.subr.bf16.mxu0 0
        %1338 = vmatpush1.bf16.xpose.msra.mxu0 0
        %1339 = vmatprep.subr.bf16.mxu0 0
        %1340 = vmatpush1.bf16.xpose.msra.mxu0 0
        %1341 = vmatprep.subr.bf16.mxu0 0
        %1342 = vmatpush1.bf16.xpose.msra.mxu0 0
        %1343 = vmatprep.mubr.bf16.mxu0 0
        %1344 = vmatmul.mubr.bf16.gmra.mrb[0].mxu0 %v1308
        %v1345 = vpop.f32.mrb[0].mxu0
        %v1346 = vadd.f32 0.0, %v1345
        %v1347 = vpop.f32.mrb[0].mxu0
        %v1348 = vpop.f32.mrb[0].mxu0
        %v1349 = vpop.f32.mrb[0].mxu0
        %1350 = vdwg.mxu0
        %v1351 = vsel %vm725, %v1346, -inf
        %1352 = vmax.xlane.f32.xlu0 %v1351
        %v1353 = vpop.xlane.xlu0 %1352
        %v1354 = vsub.f32 %v1346, %v1353
        %v1355 = vmul.f32 %v1354, 1.442695
        %v1356 = vpow.pop %v1355
        %v1357 = vsel %vm725, %v1356, 0.0
        %1358 = vadd.xlane.f32.xlu0 %v1357
        %v1359 = vpop.xlane.xlu0 %1358
        %v1360 = vrcp.pop %v1359
        %v1361 = vmul.f32 %v1356, %v1360
        %v1362 = vpack.c.bf16 %v1361, %v1361
        %v1364 = vsel %vm725, %v1362, 0
        %v1367 = vsel %vm741, %v1310, 0
        %1369 = vmatprep.subr.bf16.mxu0 0
        %1370 = vmatpush1.bf16.msra.mxu0 %v1367
        %1371 = vmatprep.subr.bf16.mxu0 0
        %1372 = vmatpush1.bf16.msra.mxu0 0
        %1373 = vmatprep.subr.bf16.mxu0 0
        %1374 = vmatpush1.bf16.msra.mxu0 0
        %1375 = vmatprep.subr.bf16.mxu0 0
        %1376 = vmatpush1.bf16.msra.mxu0 0
        %1377 = vmatprep.subr.bf16.mxu0 0
        %1378 = vmatpush1.bf16.msra.mxu0 0
        %1379 = vmatprep.subr.bf16.mxu0 0
        %1380 = vmatpush1.bf16.msra.mxu0 0
        %1381 = vmatprep.subr.bf16.mxu0 0
        %1382 = vmatpush1.bf16.msra.mxu0 0
        %1383 = vmatprep.subr.bf16.mxu0 0
        %1384 = vmatpush1.bf16.msra.mxu0 0
        %1385 = vmatprep.subr.bf16.mxu0 0
        %1386 = vmatpush1.bf16.msra.mxu0 0
        %1387 = vmatprep.subr.bf16.mxu0 0
        %1388 = vmatpush1.bf16.msra.mxu0 0
        %1389 = vmatprep.subr.bf16.mxu0 0
        %1390 = vmatpush1.bf16.msra.mxu0 0
        %1391 = vmatprep.subr.bf16.mxu0 0
        %1392 = vmatpush1.bf16.msra.mxu0 0
        %1393 = vmatprep.subr.bf16.mxu0 0
        %1394 = vmatpush1.bf16.msra.mxu0 0
        %1395 = vmatprep.subr.bf16.mxu0 0
        %1396 = vmatpush1.bf16.msra.mxu0 0
        %1397 = vmatprep.subr.bf16.mxu0 0
        %1398 = vmatpush1.bf16.msra.mxu0 0
        %1399 = vmatprep.subr.bf16.mxu0 0
        %1400 = vmatpush1.bf16.msra.mxu0 0
        %1401 = vmatprep.mubr.bf16.mxu0 0
        %1402 = vmatmul.mubr.bf16.gmra.mrb[0].mxu0 %v1364
        %v1403 = vpop.f32.mrb[0].mxu0
        %v1404 = vadd.f32 0.0, %v1403
        %v1405 = vpop.f32.mrb[0].mxu0
        %v1406 = vpop.f32.mrb[0].mxu0
        %v1407 = vpop.f32.mrb[0].mxu0
        %1408 = vdwg.mxu0
        %v1409 = vpack.c.bf16 %v1404, %v1404
        %s1410 = scalar_lea.vmem %s3, 192
        %v1411 = vld [vmem:[%s1410] sm:$0xf]
        %v1412 = vld [vmem:[%s1410 + $0x4] sm:$0xf]
        %v1413 = vld [vmem:[%s1410 + $0x8] sm:$0xf]
        %v1414 = vld [vmem:[%s1410 + $0xc] sm:$0xf]
        %v1415 = vld [vmem:[%s1410 + $0x10] sm:$0xf]
        %v1416 = vld [vmem:[%s1410 + $0x14] sm:$0xf]
        %v1417 = vld [vmem:[%s1410 + $0x18] sm:$0xf]
        %v1418 = vld [vmem:[%s1410 + $0x1c] sm:$0xf]
        %v1419 = vld [vmem:[%s1410 + $0x20] sm:$0xf]
        %v1420 = vld [vmem:[%s1410 + $0x24] sm:$0xf]
        %v1421 = vld [vmem:[%s1410 + $0x28] sm:$0xf]
        %v1422 = vld [vmem:[%s1410 + $0x2c] sm:$0xf]
        %v1423 = vld [vmem:[%s1410 + $0x30] sm:$0xf]
        %v1424 = vld [vmem:[%s1410 + $0x34] sm:$0xf]
        %v1425 = vld [vmem:[%s1410 + $0x38] sm:$0xf]
        %v1426 = vld [vmem:[%s1410 + $0x3c] sm:$0xf]
        %v1443 = vunpack.c.l.b16 %v1411
        %v1444 = vunpack.c.l.b16 %v1412
        %v1445 = vunpack.c.l.b16 %v1413
        %v1446 = vunpack.c.l.b16 %v1414
        %v1447 = vunpack.c.l.b16 %v1415
        %v1448 = vunpack.c.l.b16 %v1416
        %v1449 = vunpack.c.l.b16 %v1417
        %v1450 = vunpack.c.l.b16 %v1418
        %v1451 = vunpack.c.l.b16 %v1419
        %v1452 = vunpack.c.l.b16 %v1420
        %v1453 = vunpack.c.l.b16 %v1421
        %v1454 = vunpack.c.l.b16 %v1422
        %v1455 = vunpack.c.l.b16 %v1423
        %v1456 = vunpack.c.l.b16 %v1424
        %v1457 = vunpack.c.l.b16 %v1425
        %v1458 = vunpack.c.l.b16 %v1426
        %v1459 = vpack.c.b16 %v1444, %v1443
        %v1460 = vpack.c.b16 %v1446, %v1445
        %v1461 = vpack.c.b16 %v1448, %v1447
        %v1462 = vpack.c.b16 %v1450, %v1449
        %v1463 = vpack.c.b16 %v1452, %v1451
        %v1464 = vpack.c.b16 %v1454, %v1453
        %v1465 = vpack.c.b16 %v1456, %v1455
        %v1466 = vpack.c.b16 %v1458, %v1457
        %1475 = vmatprep.subr.bf16.mxu0 0
        %1476 = vmatpush1.bf16.msra.mxu0 %v1459
        %1477 = vmatprep.subr.bf16.mxu0 0
        %1478 = vmatpush1.bf16.msra.mxu0 %v1460
        %1479 = vmatprep.subr.bf16.mxu0 0
        %1480 = vmatpush1.bf16.msra.mxu0 %v1461
        %1481 = vmatprep.subr.bf16.mxu0 0
        %1482 = vmatpush1.bf16.msra.mxu0 %v1462
        %1483 = vmatprep.subr.bf16.mxu0 0
        %1484 = vmatpush1.bf16.msra.mxu0 %v1463
        %1485 = vmatprep.subr.bf16.mxu0 0
        %1486 = vmatpush1.bf16.msra.mxu0 %v1464
        %1487 = vmatprep.subr.bf16.mxu0 0
        %1488 = vmatpush1.bf16.msra.mxu0 %v1465
        %1489 = vmatprep.subr.bf16.mxu0 0
        %1490 = vmatpush1.bf16.msra.mxu0 %v1466
        %1491 = vmatprep.subr.bf16.mxu0 0
        %1492 = vmatpush1.bf16.msra.mxu0 0
        %1493 = vmatprep.subr.bf16.mxu0 0
        %1494 = vmatpush1.bf16.msra.mxu0 0
        %1495 = vmatprep.subr.bf16.mxu0 0
        %1496 = vmatpush1.bf16.msra.mxu0 0
        %1497 = vmatprep.subr.bf16.mxu0 0
        %1498 = vmatpush1.bf16.msra.mxu0 0
        %1499 = vmatprep.subr.bf16.mxu0 0
        %1500 = vmatpush1.bf16.msra.mxu0 0
        %1501 = vmatprep.subr.bf16.mxu0 0
        %1502 = vmatpush1.bf16.msra.mxu0 0
        %1503 = vmatprep.subr.bf16.mxu0 0
        %1504 = vmatpush1.bf16.msra.mxu0 0
        %1505 = vmatprep.subr.bf16.mxu0 0
        %1506 = vmatpush1.bf16.msra.mxu0 0
        %1507 = vmatprep.mubr.bf16.mxu0 0
        %1508 = vmatmul.mubr.bf16.gmra.mrb[0].mxu0 %v1409
        %v1509 = vpop.f32.mrb[0].mxu0
        %v1510 = vadd.f32 0.0, %v1509
        %v1511 = vpop.f32.mrb[0].mxu0
        %v1512 = vpop.f32.mrb[0].mxu0
        %v1513 = vpop.f32.mrb[0].mxu0
        %1514 = vdwg.mxu0
        %v1515 = vadd.f32 %v1306, %v1510
        %v1516 = vld [vmem:[%s4] sm:$0x1]
        %v1518 = vlaneseq
        %v1519 = vshrl.u32 %v1518, 7
        %v1520 = vsub.s32 0, %v1519
        %v1521 = vrot.slane %v1516, %v1520
        %v1523 = vadd.f32 %v1515, %v1521
        %1524 = vst.msk [vmem:[%s215] sm:$0xff] %vm431, %v1523
        %s1525 = sand.u32 %s137, 1
        %s1526 = scalar_lea.sflag [#allocation3], %s1525
        %s1527 = sand.u32 %s137, 1
        %s1528 = smul.addr %s1527, 8
        %s1529 = scalar_lea.vmem [#allocation2], %s1528
        // Predicated region
        $region41: #{tpu_custom_call.1} parent=39 // pred_check
          %p1530 = pneg %p147
        $region42: #{tpu_custom_call.1} parent=39 // pred_check_branch
          %1532 = sbr.rel (%p1530) target = $region44
        $region43: #{tpu_custom_call.1} parent=39 // pred_region
          %s1534 = ssub.s32 128, 128
          %1535 = vsyncadd %s1526, %s1534
          %s1536 = smul.addr %s19, 128
          %s1537 = scalar_lea.hbm %s5, %s1536
          %s1539 = sshll.u32 %s1529, 4
          %s1540 = int_to_ptr.vmem [resolvable:$true] %s1539
          %1542 = dma.vmem_to_hbm [thread:$0]  %s1540, 128, %s1537, %s1526
        $region44: #{tpu_custom_call.1} parent=39 // pred_fallthru
          _
      $region40: #{tpu_custom_call.1} parent=5 // pred_fallthru
        _
      %p1543 = scmp.le.s32.totalorder 2, %s14
      // Predicated region
      $region45: #{tpu_custom_call.1} parent=5 // pred_check
        %p1544 = pneg %p1543
      $region46: #{tpu_custom_call.1} parent=5 // pred_check_branch
        %1546 = sbr.rel (%p1544) target = $region48
      $region47: #{tpu_custom_call.1} parent=5 // pred_region
        %s1547 = ssub.s32 %s14, 2
        // Predicated region
        $region49: #{tpu_custom_call.1} parent=47 // pred_check
          %p1548 = pneg %p153
        $region50: #{tpu_custom_call.1} parent=47 // pred_check_branch
          %1550 = sbr.rel (%p1548) target = $region52
        $region51: #{tpu_custom_call.1} parent=47 // pred_region
          %s1551 = sand.u32 %s138, 1
          %s1552 = scalar_lea.sflag [#allocation3], %s1551
          %s1553 = sand.u32 %s138, 1
          %s1554 = smul.addr %s1553, 8
          %s1555 = scalar_lea.vmem [#allocation2], %s1554
          %1556 = dma.done %s1552, 128
        $region52: #{tpu_custom_call.1} parent=47 // pred_fallthru
          _
      $region48: #{tpu_custom_call.1} parent=5 // pred_fallthru
        _
    $region6: #{tpu_custom_call.1} parent=1 // loop_footer
      %s18 = sadd.s32 1, %s14
    $region7: #{tpu_custom_call.1} parent=1 // loop_footer_branch
      %13 = sbr.rel target = $region3
    $region8: #{tpu_custom_call.1} parent=1 // loop_exit
      _
    %1557 = vsyncpa [#allocation3], 1
    %s1558 = scalar_lea.sflag [#allocation3], 1
    %1559 = vsyncpa %s1558, 1

</llo_original>
